<compile_context>
chip_gen: v7x
topology: tpu7x:2x2x1
jax: 0.10.0
libtpu: 0.0.40
codegen_flags: <defaults>
</compile_context>

<pallas_src>
from functools import partial

import jax
import jax.numpy as jnp
from jax import lax
from jax.experimental import pallas as pl
from jax.experimental.pallas import tpu as pltpu


def _softmax_over_sublanes(x):
    """Softmax over axis 0 (rows / sublanes). x is f32; denom via EUP recip."""
    m = jnp.max(x, axis=0, keepdims=True)
    e = jnp.exp(x - m)
    s = jnp.sum(e, axis=0, keepdims=True)
    return e * pl.reciprocal(s, approx=True)


def _softmax_over_lanes(x):
    """Softmax over axis 1 (columns / lanes). x is f32; denom via EUP recip."""
    m = jnp.max(x, axis=1, keepdims=True)
    e = jnp.exp(x - m)
    s = jnp.sum(e, axis=1, keepdims=True)
    return e * pl.reciprocal(s, approx=True)


def linear_attention_kernel(x_ref, wqkv_ref, wout_ref, bout_ref, g_ref, o_ref,
                            *, heads, dim_head, eps):
    hidden = heads * dim_head

    # to_qkv: Conv1d(dim, 3*hidden, 1, bias=False) == channel matmul (bf16 in,
    # f32 accumulation on the MXU).
    qkv = jnp.dot(wqkv_ref[...], x_ref[...],
                  preferred_element_type=jnp.float32)       # (3*hidden, N) f32

    y = None
    for h in range(heads):                 # heads is small & static -> unrolled
        lo = h * dim_head
        q_h = qkv[lo:lo + dim_head, :]                              # (d, N)
        k_h = qkv[hidden + lo:hidden + lo + dim_head, :]            # (d, N)
        v_h = qkv[2 * hidden + lo:2 * hidden + lo + dim_head, :]    # (d, N)

        # softmax(q) over dim_head; softmax(k) over sequence.  `scale` is
        # folded into w_out on the host, so no extra multiply here.
        q_h = _softmax_over_sublanes(q_h).astype(jnp.bfloat16)
        k_h = _softmax_over_lanes(k_h).astype(jnp.bfloat16)
        v_b = v_h.astype(jnp.bfloat16)

        # ctx_t[e, d] = sum_n v[e, n] * k[d, n]   (== context[d, e], no `.T`:
        # the lane axis is contracted directly -> MXU transpose_rhs form).
        ctx_t = lax.dot_general(
            v_b, k_h, dimension_numbers=(((1,), (1,)), ((), ())),
            preferred_element_type=jnp.float32)                     # (e, d)

        # out_h[e, n] = sum_d context[d, e] * q[d, n]  (standard matmul)
        out_h = jnp.dot(ctx_t.astype(jnp.bfloat16), q_h,
                        preferred_element_type=jnp.float32)         # (e, N)

        # Accumulate the output projection per head instead of concatenating:
        # y[c, n] += sum_e w_out[c, h*d + e] * out_h[e, n]
        w_h = wout_ref[:, lo:lo + dim_head]                         # (C, d) bf16
        y_h = jnp.dot(w_h, out_h.astype(jnp.bfloat16),
                      preferred_element_type=jnp.float32)           # (C, N)
        y = y_h if y is None else y + y_h

    y = y + bout_ref[...]                  # Conv1d bias, (C, 1) broadcast

    # LayerNorm over channels (unbiased=False), single-pass statistics.
    inv_c = 1.0 / y.shape[0]
    mean = jnp.sum(y, axis=0, keepdims=True) * inv_c
    mean_sq = jnp.sum(y * y, axis=0, keepdims=True) * inv_c
    var = mean_sq - mean * mean
    o_ref[...] = (y - mean) * (lax.rsqrt(var + eps) * g_ref[...])


def linear_attention(x, w_qkv, w_out, b_out, g, *, heads, dim_head):
    """x: (B, C, N) f32; w_qkv: (3*hidden, C); w_out: (C, hidden);
    b_out, g: (C, 1)."""
    B, C, N = x.shape
    hidden = heads * dim_head
    scale = dim_head ** (-0.5)
    eps = 1e-5  # f32 input -> matches the PyTorch LayerNorm eps

    # Host-side prep: fold the softmax scale into the output projection and
    # cast the MXU operands to bf16 (halves DMA/VMEM bytes; f32 accumulation).
    x_b = x.astype(jnp.bfloat16)
    w_qkv_b = w_qkv.astype(jnp.bfloat16)                     # (3*hidden, C)
    w_out_b = (w_out * scale).astype(jnp.bfloat16)           # (C, hidden)
    b_out = b_out.astype(jnp.float32)
    g = g.astype(jnp.float32)

    kernel = partial(linear_attention_kernel,
                     heads=heads, dim_head=dim_head, eps=eps)

    flops = B * N * (2 * 3 * hidden * C
                     + heads * (4 * dim_head * dim_head + 2 * C * dim_head))
    transcendentals = B * (2 * hidden * N + heads * (N + dim_head) + N)
    bytes_accessed = (B * C * N * (2 + 4)          # x (bf16) in, out (f32)
                      + 4 * hidden * C * 2         # weights (bf16)
                      + 2 * C * 4)                 # bias + g

    return pl.pallas_call(
        kernel,
        out_shape=jax.ShapeDtypeStruct((B, C, N), jnp.float32),
        grid=(B,),
        in_specs=[
            pl.BlockSpec((pl.Squeezed(), C, N), lambda i: (i, 0, 0)),  # x
            pl.BlockSpec((3 * hidden, C), lambda i: (0, 0)),           # w_qkv
            pl.BlockSpec((C, hidden), lambda i: (0, 0)),               # w_out*scale
            pl.BlockSpec((C, 1), lambda i: (0, 0)),                    # b_out
            pl.BlockSpec((C, 1), lambda i: (0, 0)),                    # g
        ],
        out_specs=pl.BlockSpec((pl.Squeezed(), C, N), lambda i: (i, 0, 0)),
        compiler_params=pltpu.CompilerParams(
            dimension_semantics=("parallel",)),
        cost_estimate=pl.CostEstimate(
            flops=flops, transcendentals=transcendentals,
            bytes_accessed=bytes_accessed),
    )(x_b, w_qkv_b, w_out_b, b_out, g)


def linear_attention_ref(x, w_qkv, w_out, b_out, g, *, heads, dim_head):
    """Pure-JAX f32 reference mirroring the PyTorch forward."""
    B, C, N = x.shape
    hidden = heads * dim_head
    scale = dim_head ** (-0.5)

    qkv = jnp.einsum('oc,bcn->bon', w_qkv, x)                      # (B, 3*hidden, N)
    q, k, v = jnp.split(qkv, 3, axis=1)
    q = q.reshape(B, heads, dim_head, N)
    k = k.reshape(B, heads, dim_head, N)
    v = v.reshape(B, heads, dim_head, N)

    q = jax.nn.softmax(q, axis=-2) * scale
    k = jax.nn.softmax(k, axis=-1)

    context = jnp.einsum('bhdn,bhen->bhde', k, v)
    out = jnp.einsum('bhde,bhdn->bhen', context, q)
    out = out.reshape(B, hidden, N)

    y = jnp.einsum('ch,bhn->bcn', w_out, out) + b_out[None, :, :]
    mean = jnp.mean(y, axis=1, keepdims=True)
    var = jnp.mean((y - mean) ** 2, axis=1, keepdims=True)
    return (y - mean) * jax.lax.rsqrt(var + 1e-5) * g[None, :, :]


if __name__ == "__main__":
    B, DIM, N = 2, 8, 16
    HEADS, DIM_HEAD = 4, 32
    HIDDEN = HEADS * DIM_HEAD

    key = jax.random.PRNGKey(0)
    kx, kw1, kw2, kb = jax.random.split(key, 4)

    x = jax.random.normal(kx, (B, DIM, N), dtype=jnp.float32)
    # Conv1d(dim, hidden*3, 1, bias=False) weight: (3*hidden, dim, 1) -> squeeze
    w_qkv = jax.random.normal(kw1, (3 * HIDDEN, DIM), dtype=jnp.float32) * 0.1
    # Conv1d(hidden, dim, 1) weight: (dim, hidden, 1) -> squeeze; bias: (dim,)
    w_out = jax.random.normal(kw2, (DIM, HIDDEN), dtype=jnp.float32) * 0.1
    b_out = (jax.random.normal(kb, (DIM,), dtype=jnp.float32) * 0.1).reshape(DIM, 1)
    # LayerNorm g parameter: (1, dim, 1) -> (dim, 1), initialized to ones
    g = jnp.ones((DIM, 1), dtype=jnp.float32)

    out = linear_attention(x, w_qkv, w_out, b_out, g,
                           heads=HEADS, dim_head=DIM_HEAD)
    out = jax.block_until_ready(out)

    ref = linear_attention_ref(x, w_qkv, w_out, b_out, g,
                               heads=HEADS, dim_head=DIM_HEAD)
    assert out.shape == (B, DIM, N)
    # bf16 MXU operands + approx reciprocal -> compare against f32 ref with a
    # correspondingly looser tolerance.
    max_err = jnp.max(jnp.abs(out - ref))
    assert jnp.allclose(out, ref, atol=3e-2, rtol=3e-2), f"max err {max_err}"

    print("KERNEL_OK")
</pallas_src>

<mosaic_0001>
module attributes {stable_mosaic.version = 11 : i64} {
  func.func @linear_attention_kernel(%arg0: i32, %arg1: memref<1x8x16xbf16, #tpu.memory_space<vmem>>, %arg2: memref<384x8xbf16, #tpu.memory_space<vmem>>, %arg3: memref<8x128xbf16, #tpu.memory_space<vmem>>, %arg4: memref<8x1xf32, #tpu.memory_space<vmem>>, %arg5: memref<8x1xf32, #tpu.memory_space<vmem>>, %arg6: memref<1x8x16xf32, #tpu.memory_space<vmem>>) attributes {dimension_semantics = [#tpu.dimension_semantics<parallel>], iteration_bounds = array<i64: 2>, scalar_prefetch = 0 : i64, scratch_operands = 0 : i64, tpu.core_type = #tpu.core_type<tc>, window_params = [{transform_indices = @transform_0, window_bounds = array<i64: 1, 8, 16>}, {pipeline_mode = #tpu.pipeline_mode<synchronous>, transform_indices = @transform_1, window_bounds = array<i64: 384, 8>}, {pipeline_mode = #tpu.pipeline_mode<synchronous>, transform_indices = @transform_2, window_bounds = array<i64: 8, 128>}, {pipeline_mode = #tpu.pipeline_mode<synchronous>, transform_indices = @transform_3, window_bounds = array<i64: 8, 1>}, {pipeline_mode = #tpu.pipeline_mode<synchronous>, transform_indices = @transform_4, window_bounds = array<i64: 8, 1>}, {transform_indices = @transform_5, window_bounds = array<i64: 1, 8, 16>}]} {
    %c0 = arith.constant 0 : index
    %c0_0 = arith.constant 0 : index
    %0 = vector.load %arg2[%c0, %c0_0] : memref<384x8xbf16, #tpu.memory_space<vmem>>, vector<384x8xbf16>
    %c0_1 = arith.constant 0 : index
    %c0_2 = arith.constant 0 : index
    %c0_3 = arith.constant 0 : index
    %1 = vector.load %arg1[%c0_1, %c0_2, %c0_3] : memref<1x8x16xbf16, #tpu.memory_space<vmem>>, vector<1x8x16xbf16>
    %2 = vector.shape_cast %1 : vector<1x8x16xbf16> to vector<8x16xbf16>
    %cst = arith.constant dense<0.000000e+00> : vector<384x16xf32>
    %3 = tpu.matmul %0, %2, %cst {dimension_numbers = #tpu.dot_dimension_numbers<[1], [0], [0], [1], [0, 0, 1, 1], [], []>} : vector<384x8xbf16>, vector<8x16xbf16>, vector<384x16xf32> -> vector<384x16xf32>
    %4 = vector.extract_strided_slice %3 {offsets = [0, 0], sizes = [32, 16], strides = [1, 1]} : vector<384x16xf32> to vector<32x16xf32>
    %5 = vector.extract_strided_slice %3 {offsets = [128, 0], sizes = [32, 16], strides = [1, 1]} : vector<384x16xf32> to vector<32x16xf32>
    %6 = vector.extract_strided_slice %3 {offsets = [256, 0], sizes = [32, 16], strides = [1, 1]} : vector<384x16xf32> to vector<32x16xf32>
    %cst_4 = arith.constant dense<0xFF800000> : vector<16xf32>
    %7 = vector.multi_reduction <maximumf>, %4, %cst_4 [0] : vector<32x16xf32> to vector<16xf32>
    %8 = vector.shape_cast %7 : vector<16xf32> to vector<1x16xf32>
    %9 = vector.broadcast %8 : vector<1x16xf32> to vector<32x16xf32>
    %10 = arith.subf %4, %9 : vector<32x16xf32>
    %11 = math.exp %10 : vector<32x16xf32>
    %cst_5 = arith.constant dense<0.000000e+00> : vector<16xf32>
    %12 = vector.multi_reduction <add>, %11, %cst_5 [0] : vector<32x16xf32> to vector<16xf32>
    %13 = vector.shape_cast %12 : vector<16xf32> to vector<1x16xf32>
    %14 = tpu.reciprocal %13 {approx = true} : vector<1x16xf32> -> vector<1x16xf32>
    %15 = vector.broadcast %14 : vector<1x16xf32> to vector<32x16xf32>
    %16 = arith.mulf %11, %15 : vector<32x16xf32>
    %17 = arith.truncf %16 : vector<32x16xf32> to vector<32x16xbf16>
    %cst_6 = arith.constant dense<0xFF800000> : vector<32xf32>
    %18 = vector.multi_reduction <maximumf>, %5, %cst_6 [1] : vector<32x16xf32> to vector<32xf32>
    %19 = vector.shape_cast %18 : vector<32xf32> to vector<32x1xf32>
    %20 = vector.broadcast %19 : vector<32x1xf32> to vector<32x16xf32>
    %21 = arith.subf %5, %20 : vector<32x16xf32>
    %22 = math.exp %21 : vector<32x16xf32>
    %cst_7 = arith.constant dense<0.000000e+00> : vector<32xf32>
    %23 = vector.multi_reduction <add>, %22, %cst_7 [1] : vector<32x16xf32> to vector<32xf32>
    %24 = vector.shape_cast %23 : vector<32xf32> to vector<32x1xf32>
    %25 = tpu.reciprocal %24 {approx = true} : vector<32x1xf32> -> vector<32x1xf32>
    %26 = vector.broadcast %25 : vector<32x1xf32> to vector<32x16xf32>
    %27 = arith.mulf %22, %26 : vector<32x16xf32>
    %28 = arith.truncf %27 : vector<32x16xf32> to vector<32x16xbf16>
    %29 = arith.truncf %6 : vector<32x16xf32> to vector<32x16xbf16>
    %cst_8 = arith.constant dense<0.000000e+00> : vector<32x32xf32>
    %30 = tpu.matmul %29, %28, %cst_8 {dimension_numbers = #tpu.dot_dimension_numbers<[1], [1], [0], [0], [0, 0, 1, 0], [], []>} : vector<32x16xbf16>, vector<32x16xbf16>, vector<32x32xf32> -> vector<32x32xf32>
    %31 = arith.truncf %30 : vector<32x32xf32> to vector<32x32xbf16>
    %cst_9 = arith.constant dense<0.000000e+00> : vector<32x16xf32>
    %32 = tpu.matmul %31, %17, %cst_9 {dimension_numbers = #tpu.dot_dimension_numbers<[1], [0], [0], [1], [0, 0, 1, 1], [], []>} : vector<32x32xbf16>, vector<32x16xbf16>, vector<32x16xf32> -> vector<32x16xf32>
    %c0_10 = arith.constant 0 : index
    %c0_11 = arith.constant 0 : index
    %33 = vector.load %arg3[%c0_10, %c0_11] : memref<8x128xbf16, #tpu.memory_space<vmem>>, vector<8x32xbf16>
    %34 = arith.truncf %32 : vector<32x16xf32> to vector<32x16xbf16>
    %cst_12 = arith.constant dense<0.000000e+00> : vector<8x16xf32>
    %35 = tpu.matmul %33, %34, %cst_12 {dimension_numbers = #tpu.dot_dimension_numbers<[1], [0], [0], [1], [0, 0, 1, 1], [], []>} : vector<8x32xbf16>, vector<32x16xbf16>, vector<8x16xf32> -> vector<8x16xf32>
    %36 = vector.extract_strided_slice %3 {offsets = [32, 0], sizes = [32, 16], strides = [1, 1]} : vector<384x16xf32> to vector<32x16xf32>
    %37 = vector.extract_strided_slice %3 {offsets = [160, 0], sizes = [32, 16], strides = [1, 1]} : vector<384x16xf32> to vector<32x16xf32>
    %38 = vector.extract_strided_slice %3 {offsets = [288, 0], sizes = [32, 16], strides = [1, 1]} : vector<384x16xf32> to vector<32x16xf32>
    %cst_13 = arith.constant dense<0xFF800000> : vector<16xf32>
    %39 = vector.multi_reduction <maximumf>, %36, %cst_13 [0] : vector<32x16xf32> to vector<16xf32>
    %40 = vector.shape_cast %39 : vector<16xf32> to vector<1x16xf32>
    %41 = vector.broadcast %40 : vector<1x16xf32> to vector<32x16xf32>
    %42 = arith.subf %36, %41 : vector<32x16xf32>
    %43 = math.exp %42 : vector<32x16xf32>
    %cst_14 = arith.constant dense<0.000000e+00> : vector<16xf32>
    %44 = vector.multi_reduction <add>, %43, %cst_14 [0] : vector<32x16xf32> to vector<16xf32>
    %45 = vector.shape_cast %44 : vector<16xf32> to vector<1x16xf32>
    %46 = tpu.reciprocal %45 {approx = true} : vector<1x16xf32> -> vector<1x16xf32>
    %47 = vector.broadcast %46 : vector<1x16xf32> to vector<32x16xf32>
    %48 = arith.mulf %43, %47 : vector<32x16xf32>
    %49 = arith.truncf %48 : vector<32x16xf32> to vector<32x16xbf16>
    %cst_15 = arith.constant dense<0xFF800000> : vector<32xf32>
    %50 = vector.multi_reduction <maximumf>, %37, %cst_15 [1] : vector<32x16xf32> to vector<32xf32>
    %51 = vector.shape_cast %50 : vector<32xf32> to vector<32x1xf32>
    %52 = vector.broadcast %51 : vector<32x1xf32> to vector<32x16xf32>
    %53 = arith.subf %37, %52 : vector<32x16xf32>
    %54 = math.exp %53 : vector<32x16xf32>
    %cst_16 = arith.constant dense<0.000000e+00> : vector<32xf32>
    %55 = vector.multi_reduction <add>, %54, %cst_16 [1] : vector<32x16xf32> to vector<32xf32>
    %56 = vector.shape_cast %55 : vector<32xf32> to vector<32x1xf32>
    %57 = tpu.reciprocal %56 {approx = true} : vector<32x1xf32> -> vector<32x1xf32>
    %58 = vector.broadcast %57 : vector<32x1xf32> to vector<32x16xf32>
    %59 = arith.mulf %54, %58 : vector<32x16xf32>
    %60 = arith.truncf %59 : vector<32x16xf32> to vector<32x16xbf16>
    %61 = arith.truncf %38 : vector<32x16xf32> to vector<32x16xbf16>
    %cst_17 = arith.constant dense<0.000000e+00> : vector<32x32xf32>
    %62 = tpu.matmul %61, %60, %cst_17 {dimension_numbers = #tpu.dot_dimension_numbers<[1], [1], [0], [0], [0, 0, 1, 0], [], []>} : vector<32x16xbf16>, vector<32x16xbf16>, vector<32x32xf32> -> vector<32x32xf32>
    %63 = arith.truncf %62 : vector<32x32xf32> to vector<32x32xbf16>
    %cst_18 = arith.constant dense<0.000000e+00> : vector<32x16xf32>
    %64 = tpu.matmul %63, %49, %cst_18 {dimension_numbers = #tpu.dot_dimension_numbers<[1], [0], [0], [1], [0, 0, 1, 1], [], []>} : vector<32x32xbf16>, vector<32x16xbf16>, vector<32x16xf32> -> vector<32x16xf32>
    %c0_19 = arith.constant 0 : index
    %c32 = arith.constant 32 : index
    %65 = vector.load %arg3[%c0_19, %c32] : memref<8x128xbf16, #tpu.memory_space<vmem>>, vector<8x32xbf16>
    %66 = arith.truncf %64 : vector<32x16xf32> to vector<32x16xbf16>
    %cst_20 = arith.constant dense<0.000000e+00> : vector<8x16xf32>
    %67 = tpu.matmul %65, %66, %cst_20 {dimension_numbers = #tpu.dot_dimension_numbers<[1], [0], [0], [1], [0, 0, 1, 1], [], []>} : vector<8x32xbf16>, vector<32x16xbf16>, vector<8x16xf32> -> vector<8x16xf32>
    %68 = arith.addf %35, %67 : vector<8x16xf32>
    %69 = vector.extract_strided_slice %3 {offsets = [64, 0], sizes = [32, 16], strides = [1, 1]} : vector<384x16xf32> to vector<32x16xf32>
    %70 = vector.extract_strided_slice %3 {offsets = [192, 0], sizes = [32, 16], strides = [1, 1]} : vector<384x16xf32> to vector<32x16xf32>
    %71 = vector.extract_strided_slice %3 {offsets = [320, 0], sizes = [32, 16], strides = [1, 1]} : vector<384x16xf32> to vector<32x16xf32>
    %cst_21 = arith.constant dense<0xFF800000> : vector<16xf32>
    %72 = vector.multi_reduction <maximumf>, %69, %cst_21 [0] : vector<32x16xf32> to vector<16xf32>
    %73 = vector.shape_cast %72 : vector<16xf32> to vector<1x16xf32>
    %74 = vector.broadcast %73 : vector<1x16xf32> to vector<32x16xf32>
    %75 = arith.subf %69, %74 : vector<32x16xf32>
    %76 = math.exp %75 : vector<32x16xf32>
    %cst_22 = arith.constant dense<0.000000e+00> : vector<16xf32>
    %77 = vector.multi_reduction <add>, %76, %cst_22 [0] : vector<32x16xf32> to vector<16xf32>
    %78 = vector.shape_cast %77 : vector<16xf32> to vector<1x16xf32>
    %79 = tpu.reciprocal %78 {approx = true} : vector<1x16xf32> -> vector<1x16xf32>
    %80 = vector.broadcast %79 : vector<1x16xf32> to vector<32x16xf32>
    %81 = arith.mulf %76, %80 : vector<32x16xf32>
    %82 = arith.truncf %81 : vector<32x16xf32> to vector<32x16xbf16>
    %cst_23 = arith.constant dense<0xFF800000> : vector<32xf32>
    %83 = vector.multi_reduction <maximumf>, %70, %cst_23 [1] : vector<32x16xf32> to vector<32xf32>
    %84 = vector.shape_cast %83 : vector<32xf32> to vector<32x1xf32>
    %85 = vector.broadcast %84 : vector<32x1xf32> to vector<32x16xf32>
    %86 = arith.subf %70, %85 : vector<32x16xf32>
    %87 = math.exp %86 : vector<32x16xf32>
    %cst_24 = arith.constant dense<0.000000e+00> : vector<32xf32>
    %88 = vector.multi_reduction <add>, %87, %cst_24 [1] : vector<32x16xf32> to vector<32xf32>
    %89 = vector.shape_cast %88 : vector<32xf32> to vector<32x1xf32>
    %90 = tpu.reciprocal %89 {approx = true} : vector<32x1xf32> -> vector<32x1xf32>
    %91 = vector.broadcast %90 : vector<32x1xf32> to vector<32x16xf32>
    %92 = arith.mulf %87, %91 : vector<32x16xf32>
    %93 = arith.truncf %92 : vector<32x16xf32> to vector<32x16xbf16>
    %94 = arith.truncf %71 : vector<32x16xf32> to vector<32x16xbf16>
    %cst_25 = arith.constant dense<0.000000e+00> : vector<32x32xf32>
    %95 = tpu.matmul %94, %93, %cst_25 {dimension_numbers = #tpu.dot_dimension_numbers<[1], [1], [0], [0], [0, 0, 1, 0], [], []>} : vector<32x16xbf16>, vector<32x16xbf16>, vector<32x32xf32> -> vector<32x32xf32>
    %96 = arith.truncf %95 : vector<32x32xf32> to vector<32x32xbf16>
    %cst_26 = arith.constant dense<0.000000e+00> : vector<32x16xf32>
    %97 = tpu.matmul %96, %82, %cst_26 {dimension_numbers = #tpu.dot_dimension_numbers<[1], [0], [0], [1], [0, 0, 1, 1], [], []>} : vector<32x32xbf16>, vector<32x16xbf16>, vector<32x16xf32> -> vector<32x16xf32>
    %c0_27 = arith.constant 0 : index
    %c64 = arith.constant 64 : index
    %98 = vector.load %arg3[%c0_27, %c64] : memref<8x128xbf16, #tpu.memory_space<vmem>>, vector<8x32xbf16>
    %99 = arith.truncf %97 : vector<32x16xf32> to vector<32x16xbf16>
    %cst_28 = arith.constant dense<0.000000e+00> : vector<8x16xf32>
    %100 = tpu.matmul %98, %99, %cst_28 {dimension_numbers = #tpu.dot_dimension_numbers<[1], [0], [0], [1], [0, 0, 1, 1], [], []>} : vector<8x32xbf16>, vector<32x16xbf16>, vector<8x16xf32> -> vector<8x16xf32>
    %101 = arith.addf %68, %100 : vector<8x16xf32>
    %102 = vector.extract_strided_slice %3 {offsets = [96, 0], sizes = [32, 16], strides = [1, 1]} : vector<384x16xf32> to vector<32x16xf32>
    %103 = vector.extract_strided_slice %3 {offsets = [224, 0], sizes = [32, 16], strides = [1, 1]} : vector<384x16xf32> to vector<32x16xf32>
    %104 = vector.extract_strided_slice %3 {offsets = [352, 0], sizes = [32, 16], strides = [1, 1]} : vector<384x16xf32> to vector<32x16xf32>
    %cst_29 = arith.constant dense<0xFF800000> : vector<16xf32>
    %105 = vector.multi_reduction <maximumf>, %102, %cst_29 [0] : vector<32x16xf32> to vector<16xf32>
    %106 = vector.shape_cast %105 : vector<16xf32> to vector<1x16xf32>
    %107 = vector.broadcast %106 : vector<1x16xf32> to vector<32x16xf32>
    %108 = arith.subf %102, %107 : vector<32x16xf32>
    %109 = math.exp %108 : vector<32x16xf32>
    %cst_30 = arith.constant dense<0.000000e+00> : vector<16xf32>
    %110 = vector.multi_reduction <add>, %109, %cst_30 [0] : vector<32x16xf32> to vector<16xf32>
    %111 = vector.shape_cast %110 : vector<16xf32> to vector<1x16xf32>
    %112 = tpu.reciprocal %111 {approx = true} : vector<1x16xf32> -> vector<1x16xf32>
    %113 = vector.broadcast %112 : vector<1x16xf32> to vector<32x16xf32>
    %114 = arith.mulf %109, %113 : vector<32x16xf32>
    %115 = arith.truncf %114 : vector<32x16xf32> to vector<32x16xbf16>
    %cst_31 = arith.constant dense<0xFF800000> : vector<32xf32>
    %116 = vector.multi_reduction <maximumf>, %103, %cst_31 [1] : vector<32x16xf32> to vector<32xf32>
    %117 = vector.shape_cast %116 : vector<32xf32> to vector<32x1xf32>
    %118 = vector.broadcast %117 : vector<32x1xf32> to vector<32x16xf32>
    %119 = arith.subf %103, %118 : vector<32x16xf32>
    %120 = math.exp %119 : vector<32x16xf32>
    %cst_32 = arith.constant dense<0.000000e+00> : vector<32xf32>
    %121 = vector.multi_reduction <add>, %120, %cst_32 [1] : vector<32x16xf32> to vector<32xf32>
    %122 = vector.shape_cast %121 : vector<32xf32> to vector<32x1xf32>
    %123 = tpu.reciprocal %122 {approx = true} : vector<32x1xf32> -> vector<32x1xf32>
    %124 = vector.broadcast %123 : vector<32x1xf32> to vector<32x16xf32>
    %125 = arith.mulf %120, %124 : vector<32x16xf32>
    %126 = arith.truncf %125 : vector<32x16xf32> to vector<32x16xbf16>
    %127 = arith.truncf %104 : vector<32x16xf32> to vector<32x16xbf16>
    %cst_33 = arith.constant dense<0.000000e+00> : vector<32x32xf32>
    %128 = tpu.matmul %127, %126, %cst_33 {dimension_numbers = #tpu.dot_dimension_numbers<[1], [1], [0], [0], [0, 0, 1, 0], [], []>} : vector<32x16xbf16>, vector<32x16xbf16>, vector<32x32xf32> -> vector<32x32xf32>
    %129 = arith.truncf %128 : vector<32x32xf32> to vector<32x32xbf16>
    %cst_34 = arith.constant dense<0.000000e+00> : vector<32x16xf32>
    %130 = tpu.matmul %129, %115, %cst_34 {dimension_numbers = #tpu.dot_dimension_numbers<[1], [0], [0], [1], [0, 0, 1, 1], [], []>} : vector<32x32xbf16>, vector<32x16xbf16>, vector<32x16xf32> -> vector<32x16xf32>
    %c0_35 = arith.constant 0 : index
    %c96 = arith.constant 96 : index
    %131 = vector.load %arg3[%c0_35, %c96] : memref<8x128xbf16, #tpu.memory_space<vmem>>, vector<8x32xbf16>
    %132 = arith.truncf %130 : vector<32x16xf32> to vector<32x16xbf16>
    %cst_36 = arith.constant dense<0.000000e+00> : vector<8x16xf32>
    %133 = tpu.matmul %131, %132, %cst_36 {dimension_numbers = #tpu.dot_dimension_numbers<[1], [0], [0], [1], [0, 0, 1, 1], [], []>} : vector<8x32xbf16>, vector<32x16xbf16>, vector<8x16xf32> -> vector<8x16xf32>
    %134 = arith.addf %101, %133 : vector<8x16xf32>
    %c0_37 = arith.constant 0 : index
    %c0_38 = arith.constant 0 : index
    %135 = vector.load %arg4[%c0_37, %c0_38] : memref<8x1xf32, #tpu.memory_space<vmem>>, vector<8x1xf32>
    %136 = vector.broadcast %135 : vector<8x1xf32> to vector<8x16xf32>
    %137 = arith.addf %134, %136 : vector<8x16xf32>
    %cst_39 = arith.constant dense<0.000000e+00> : vector<16xf32>
    %138 = vector.multi_reduction <add>, %137, %cst_39 [0] : vector<8x16xf32> to vector<16xf32>
    %139 = vector.shape_cast %138 : vector<16xf32> to vector<1x16xf32>
    %cst_40 = arith.constant 1.250000e-01 : f32
    %140 = vector.broadcast %cst_40 : f32 to vector<1x16xf32>
    %141 = arith.mulf %139, %140 : vector<1x16xf32>
    %142 = arith.mulf %137, %137 : vector<8x16xf32>
    %cst_41 = arith.constant dense<0.000000e+00> : vector<16xf32>
    %143 = vector.multi_reduction <add>, %142, %cst_41 [0] : vector<8x16xf32> to vector<16xf32>
    %144 = vector.shape_cast %143 : vector<16xf32> to vector<1x16xf32>
    %cst_42 = arith.constant 1.250000e-01 : f32
    %145 = vector.broadcast %cst_42 : f32 to vector<1x16xf32>
    %146 = arith.mulf %144, %145 : vector<1x16xf32>
    %147 = arith.mulf %141, %141 : vector<1x16xf32>
    %148 = arith.subf %146, %147 : vector<1x16xf32>
    %149 = vector.broadcast %141 : vector<1x16xf32> to vector<8x16xf32>
    %150 = arith.subf %137, %149 : vector<8x16xf32>
    %cst_43 = arith.constant 9.99999974E-6 : f32
    %151 = vector.broadcast %cst_43 : f32 to vector<1x16xf32>
    %152 = arith.addf %148, %151 : vector<1x16xf32>
    %153 = math.rsqrt %152 : vector<1x16xf32>
    %c0_44 = arith.constant 0 : index
    %c0_45 = arith.constant 0 : index
    %154 = vector.load %arg5[%c0_44, %c0_45] : memref<8x1xf32, #tpu.memory_space<vmem>>, vector<8x1xf32>
    %155 = vector.broadcast %153 : vector<1x16xf32> to vector<8x16xf32>
    %156 = vector.broadcast %154 : vector<8x1xf32> to vector<8x16xf32>
    %157 = arith.mulf %155, %156 : vector<8x16xf32>
    %158 = arith.mulf %150, %157 : vector<8x16xf32>
    %c0_46 = arith.constant 0 : index
    %c0_47 = arith.constant 0 : index
    %c0_48 = arith.constant 0 : index
    %159 = vector.load %arg6[%c0_46, %c0_47, %c0_48] : memref<1x8x16xf32, #tpu.memory_space<vmem>>, vector<1x8x16xf32>
    %160 = vector.shape_cast %159 : vector<1x8x16xf32> to vector<8x16xf32>
    %161 = vector.shape_cast %158 : vector<8x16xf32> to vector<1x8x16xf32>
    tpu.vector_store %arg6[%c0_46, %c0_47, %c0_48], %161 {strides = array<i32>} : memref<1x8x16xf32, #tpu.memory_space<vmem>>, vector<1x8x16xf32>,
    return
  }
  func.func @transform_0(%arg0: i32) -> (i32, i32, i32) {
    %c0_i32 = arith.constant 0 : i32
    %c0_i32_0 = arith.constant 0 : i32
    %c0_i32_1 = arith.constant 0 : i32
    return %arg0, %c0_i32, %c0_i32_0 : i32, i32, i32
  }
  func.func @transform_1(%arg0: i32) -> (i32, i32) {
    %c0_i32 = arith.constant 0 : i32
    %c0_i32_0 = arith.constant 0 : i32
    %c0_i32_1 = arith.constant 0 : i32
    return %c0_i32, %c0_i32_0 : i32, i32
  }
  func.func @transform_2(%arg0: i32) -> (i32, i32) {
    %c0_i32 = arith.constant 0 : i32
    %c0_i32_0 = arith.constant 0 : i32
    %c0_i32_1 = arith.constant 0 : i32
    return %c0_i32, %c0_i32_0 : i32, i32
  }
  func.func @transform_3(%arg0: i32) -> (i32, i32) {
    %c0_i32 = arith.constant 0 : i32
    %c0_i32_0 = arith.constant 0 : i32
    %c0_i32_1 = arith.constant 0 : i32
    return %c0_i32, %c0_i32_0 : i32, i32
  }
  func.func @transform_4(%arg0: i32) -> (i32, i32) {
    %c0_i32 = arith.constant 0 : i32
    %c0_i32_0 = arith.constant 0 : i32
    %c0_i32_1 = arith.constant 0 : i32
    return %c0_i32, %c0_i32_0 : i32, i32
  }
  func.func @transform_5(%arg0: i32) -> (i32, i32, i32) {
    %c0_i32 = arith.constant 0 : i32
    %c0_i32_0 = arith.constant 0 : i32
    %c0_i32_1 = arith.constant 0 : i32
    return %arg0, %c0_i32, %c0_i32_0 : i32, i32, i32
  }
}

</mosaic_0001>

<llo_original>
// kernel: tpu_custom_call.1
$region0: #{tpu_custom_call.1}
  #allocation0 [shape = 'u32[]', space=smem, size = 0x4, offset = 0x4, fixed_abs, tag = 'smem constant byte address 0x4 - core index']
  #allocation1 [shape = 'u32[144,128]{1,0:T(1,128)}', space=vmem, size = 0x12000, scoped, tag = 'internal scratch']
  %s0 = inlined_call_operand.vmem [shape: bf16[2,8,16], index: 0, kind: input, shape index: {}]
  %s1 = inlined_call_operand.vmem [shape: bf16[384,8], index: 1, kind: input, shape index: {}]
  %s2 = inlined_call_operand.vmem [shape: bf16[8,128], index: 2, kind: input, shape index: {}]
  %s3 = inlined_call_operand.vmem [shape: f32[8,1], index: 3, kind: input, shape index: {}]
  %s4 = inlined_call_operand.vmem [shape: f32[8,1], index: 4, kind: input, shape index: {}]
  %s5 = inlined_call_operand.hbm [shape: f32[2,8,16], index: 5, kind: output, shape index: {}]
  %s6 = sld [smem:[#allocation0]]
  $region53: #{tpu_custom_call.1} parent=0
    _
  %s8 = ssub.s32 1, %s6
  %s9 = scalar_select 0, %s8, %s6
  $region1: #{tpu_custom_call.1} parent=0
    #allocation2 [shape = 'u8[8192]{0}', space=vmem, size = 0x2000, scoped, tag = 'output window, operand 0']
    #allocation3 [shape = 's32[2]{0}', space=sflag, size = 0x8, scoped, tag = 'scoped memory for tpu_custom_call.1']
    %10 = vsyncpa [#allocation3], 0
    %s11 = scalar_lea.sflag [#allocation3], 1
    %12 = vsyncpa %s11, 0
    loop: start=0, step=1, limit=4
    $region2: #{tpu_custom_call.1} parent=1 // loop_pre_header
      _
    $region3: #{tpu_custom_call.1} parent=1 // loop_header
      %s14 = sphi 0, %s18
      %p15 = scmp.ge.s32.totalorder %s14, 4
      %s24 = sphi 0, %s26
      %s27 = sphi 0, %s24
      %s28 = sphi 0, %s27
      %s44 = sphi 0, %s28
      %s48 = sphi 0, %s48
      %s50 = sphi 0, %s48
      %s51 = sphi 0, %s50
      %s65 = sphi 0, %s51
      %s69 = sphi 0, %s69
      %s71 = sphi 0, %s69
      %s72 = sphi 0, %s71
      %s86 = sphi 0, %s72
      %s90 = sphi 0, %s90
      %s92 = sphi 0, %s90
      %s93 = sphi 0, %s92
      %s107 = sphi 0, %s93
      %s111 = sphi 0, %s111
      %s113 = sphi 0, %s111
      %s114 = sphi 0, %s113
      %s128 = sphi 0, %s114
      %s134 = sphi 0, %s136
      %s137 = sphi 0, %s134
      %s138 = sphi 0, %s137
      %s154 = sphi 0, %s138
    $region4: #{tpu_custom_call.1} parent=1 // loop_header_branch
      %17 = sbr.rel (%p15) target = $region8
    $region5: #{tpu_custom_call.1} parent=1 // loop_body
      %s19 = ssub.s32 %s14, 1
      %s20 = ssub.s32 %s14, 2
      %s21 = sadd.s32 %s14, 1
      %s22 = ssub.s32 %s14, %s21
      %p23 = scmp.eq.s32.totalorder %s22, 0
      %s25 = sadd.s32 %s24, 1
      %s26 = scalar_select %p23, %s24, %s25
      %p29 = pneg %p23
      %p30 = scmp.eq.s32.totalorder %s14, 1
      %p31 = por %p29, %p30
      %p32 = scmp.ne.s32.totalorder %s24, %s27
      %p33 = scmp.eq.s32.totalorder %s14, 0
      %p34 = por %p32, %p33
      %p35 = scmp.ne.s32.totalorder %s24, %s27
      %p36 = scmp.eq.s32.totalorder %s19, 1
      %p37 = por %p35, %p36
      %p38 = scmp.ne.s32.totalorder %s27, %s28
      %p39 = scmp.eq.s32.totalorder %s19, 0
      %p40 = por %p38, %p39
      %p41 = scmp.ne.s32.totalorder %s27, %s28
      %p42 = scmp.eq.s32.totalorder %s20, 1
      %p43 = por %p41, %p42
      %p45 = scmp.ne.s32.totalorder %s28, %s44
      %p46 = scmp.eq.s32.totalorder %s20, 0
      %p47 = por %p45, %p46
      %s49 = sadd.s32 %s48, 1
      %p52 = scmp.eq.s32.totalorder %s14, 1
      %p53 = scmp.ne.s32.totalorder %s48, %s50
      %p54 = scmp.eq.s32.totalorder %s14, 0
      %p55 = por %p53, %p54
      %p56 = scmp.ne.s32.totalorder %s48, %s50
      %p57 = scmp.eq.s32.totalorder %s19, 1
      %p58 = por %p56, %p57
      %p59 = scmp.ne.s32.totalorder %s50, %s51
      %p60 = scmp.eq.s32.totalorder %s19, 0
      %p61 = por %p59, %p60
      %p62 = scmp.ne.s32.totalorder %s50, %s51
      %p63 = scmp.eq.s32.totalorder %s20, 1
      %p64 = por %p62, %p63
      %p66 = scmp.ne.s32.totalorder %s51, %s65
      %p67 = scmp.eq.s32.totalorder %s20, 0
      %p68 = por %p66, %p67
      %s70 = sadd.s32 %s69, 1
      %p73 = scmp.eq.s32.totalorder %s14, 1
      %p74 = scmp.ne.s32.totalorder %s69, %s71
      %p75 = scmp.eq.s32.totalorder %s14, 0
      %p76 = por %p74, %p75
      %p77 = scmp.ne.s32.totalorder %s69, %s71
      %p78 = scmp.eq.s32.totalorder %s19, 1
      %p79 = por %p77, %p78
      %p80 = scmp.ne.s32.totalorder %s71, %s72
      %p81 = scmp.eq.s32.totalorder %s19, 0
      %p82 = por %p80, %p81
      %p83 = scmp.ne.s32.totalorder %s71, %s72
      %p84 = scmp.eq.s32.totalorder %s20, 1
      %p85 = por %p83, %p84
      %p87 = scmp.ne.s32.totalorder %s72, %s86
      %p88 = scmp.eq.s32.totalorder %s20, 0
      %p89 = por %p87, %p88
      %s91 = sadd.s32 %s90, 1
      %p94 = scmp.eq.s32.totalorder %s14, 1
      %p95 = scmp.ne.s32.totalorder %s90, %s92
      %p96 = scmp.eq.s32.totalorder %s14, 0
      %p97 = por %p95, %p96
      %p98 = scmp.ne.s32.totalorder %s90, %s92
      %p99 = scmp.eq.s32.totalorder %s19, 1
      %p100 = por %p98, %p99
      %p101 = scmp.ne.s32.totalorder %s92, %s93
      %p102 = scmp.eq.s32.totalorder %s19, 0
      %p103 = por %p101, %p102
      %p104 = scmp.ne.s32.totalorder %s92, %s93
      %p105 = scmp.eq.s32.totalorder %s20, 1
      %p106 = por %p104, %p105
      %p108 = scmp.ne.s32.totalorder %s93, %s107
      %p109 = scmp.eq.s32.totalorder %s20, 0
      %p110 = por %p108, %p109
      %s112 = sadd.s32 %s111, 1
      %p115 = scmp.eq.s32.totalorder %s14, 1
      %p116 = scmp.ne.s32.totalorder %s111, %s113
      %p117 = scmp.eq.s32.totalorder %s14, 0
      %p118 = por %p116, %p117
      %p119 = scmp.ne.s32.totalorder %s111, %s113
      %p120 = scmp.eq.s32.totalorder %s19, 1
      %p121 = por %p119, %p120
      %p122 = scmp.ne.s32.totalorder %s113, %s114
      %p123 = scmp.eq.s32.totalorder %s19, 0
      %p124 = por %p122, %p123
      %p125 = scmp.ne.s32.totalorder %s113, %s114
      %p126 = scmp.eq.s32.totalorder %s20, 1
      %p127 = por %p125, %p126
      %p129 = scmp.ne.s32.totalorder %s114, %s128
      %p130 = scmp.eq.s32.totalorder %s20, 0
      %p131 = por %p129, %p130
      %s132 = ssub.s32 %s14, %s21
      %p133 = scmp.eq.s32.totalorder %s132, 0
      %s135 = sadd.s32 %s134, 1
      %s136 = scalar_select %p133, %s134, %s135
      %p139 = pneg %p133
      %p140 = scmp.eq.s32.totalorder %s14, 1
      %p141 = por %p139, %p140
      %p142 = scmp.ne.s32.totalorder %s134, %s137
      %p143 = scmp.eq.s32.totalorder %s14, 0
      %p144 = por %p142, %p143
      %p145 = scmp.ne.s32.totalorder %s134, %s137
      %p146 = scmp.eq.s32.totalorder %s19, 1
      %p147 = por %p145, %p146
      %p148 = scmp.ne.s32.totalorder %s137, %s138
      %p149 = scmp.eq.s32.totalorder %s19, 0
      %p150 = por %p148, %p149
      %p151 = scmp.ne.s32.totalorder %s137, %s138
      %p152 = scmp.eq.s32.totalorder %s20, 1
      %p153 = por %p151, %p152
      %p155 = scmp.ne.s32.totalorder %s138, %s154
      %p156 = scmp.eq.s32.totalorder %s20, 0
      %p157 = por %p155, %p156
      %p158 = scmp.le.s32.totalorder 1, %s14
      %p159 = scmp.lt.s32.totalorder %s14, 3
      %p160 = pnand %p158, %p159
      %p161 = pneg %p160
      // Predicated region
      $region9: #{tpu_custom_call.1} parent=5 // pred_check
        _
      $region10: #{tpu_custom_call.1} parent=5 // pred_check_branch
        %163 = sbr.rel (%p160) target = $region12
      $region11: #{tpu_custom_call.1} parent=5 // pred_region
        %s164 = ssub.s32 %s14, 1
        // Predicated region
        $region13: #{tpu_custom_call.1} parent=11 // pred_check
          %p165 = pneg %p61
        $region14: #{tpu_custom_call.1} parent=11 // pred_check_branch
          %167 = sbr.rel (%p165) target = $region16
        $region15: #{tpu_custom_call.1} parent=11 // pred_region
          _
        $region16: #{tpu_custom_call.1} parent=11 // pred_fallthru
          _
        // Predicated region
        $region17: #{tpu_custom_call.1} parent=11 // pred_check
          %p168 = pneg %p82
        $region18: #{tpu_custom_call.1} parent=11 // pred_check_branch
          %170 = sbr.rel (%p168) target = $region20
        $region19: #{tpu_custom_call.1} parent=11 // pred_region
          _
        $region20: #{tpu_custom_call.1} parent=11 // pred_fallthru
          _
        // Predicated region
        $region21: #{tpu_custom_call.1} parent=11 // pred_check
          %p171 = pneg %p103
        $region22: #{tpu_custom_call.1} parent=11 // pred_check_branch
          %173 = sbr.rel (%p171) target = $region24
        $region23: #{tpu_custom_call.1} parent=11 // pred_region
          _
        $region24: #{tpu_custom_call.1} parent=11 // pred_fallthru
          _
        // Predicated region
        $region25: #{tpu_custom_call.1} parent=11 // pred_check
          %p174 = pneg %p124
        $region26: #{tpu_custom_call.1} parent=11 // pred_check_branch
          %176 = sbr.rel (%p174) target = $region28
        $region27: #{tpu_custom_call.1} parent=11 // pred_region
          _
        $region28: #{tpu_custom_call.1} parent=11 // pred_fallthru
          _
      $region12: #{tpu_custom_call.1} parent=5 // pred_fallthru
        _
      %p177 = scmp.lt.s32.totalorder %s14, 2
      // Predicated region
      $region29: #{tpu_custom_call.1} parent=5 // pred_check
        %p178 = pneg %p177
      $region30: #{tpu_custom_call.1} parent=5 // pred_check_branch
        %180 = sbr.rel (%p178) target = $region32
      $region31: #{tpu_custom_call.1} parent=5 // pred_region
        // Predicated region
        $region33: #{tpu_custom_call.1} parent=31 // pred_check
          %p181 = pneg %p34
        $region34: #{tpu_custom_call.1} parent=31 // pred_check_branch
          %183 = sbr.rel (%p181) target = $region36
        $region35: #{tpu_custom_call.1} parent=31 // pred_region
          %p184 = scmp.lt.s32.totalorder %s14, 1
          %s185 = scalar_select %p184, %s14, 1
          %s186 = smul.addr %s185, 4
          %s187 = scalar_lea.vmem %s0, %s186
        $region36: #{tpu_custom_call.1} parent=31 // pred_fallthru
          _
      $region32: #{tpu_custom_call.1} parent=5 // pred_fallthru
        _
      %p188 = scmp.le.s32.totalorder 1, %s14
      %p189 = scmp.lt.s32.totalorder %s14, 3
      %p190 = pnand %p188, %p189
      %p191 = pneg %p190
      // Predicated region
      $region37: #{tpu_custom_call.1} parent=5 // pred_check
        _
      $region38: #{tpu_custom_call.1} parent=5 // pred_check_branch
        %193 = sbr.rel (%p190) target = $region40
      $region39: #{tpu_custom_call.1} parent=5 // pred_region
        %s194 = ssub.s32 %s14, 1
        %p195 = scmp.lt.s32.totalorder %s19, 1
        %s196 = scalar_select %p195, %s19, 1
        %s197 = smul.addr %s196, 4
        %s198 = scalar_lea.vmem %s0, %s197
        %p199 = pneg %p40
        %p200 = pneg %p37
        %p201 = pneg %p61
        %p202 = pneg %p58
        %p203 = pneg %p82
        %p204 = pneg %p79
        %p205 = pneg %p103
        %p206 = pneg %p100
        %p207 = pneg %p124
        %p208 = pneg %p121
        %p209 = pneg %p150
        %p210 = pneg %p147
        %s211 = sand.u32 %s137, 1
        %s212 = scalar_lea.sflag [#allocation3], %s211
        %s213 = sand.u32 %s137, 1
        %s214 = smul.addr %s213, 8
        %s215 = scalar_lea.vmem [#allocation2], %s214
        %p216 = scmp.lt.s32.totalorder %s19, 1
        %s217 = scalar_select %p216, %s19, 1
        %s218 = smul.addr %s217, 4
        %s219 = scalar_lea.vmem %s0, %s218
        %v221 = vld [vmem:[%s1] sm:$0xf]
        %v222 = vld [vmem:[%s1 + $0x4] sm:$0xf]
        %v223 = vld [vmem:[%s1 + $0x8] sm:$0xf]
        %v224 = vld [vmem:[%s1 + $0xc] sm:$0xf]
        %v225 = vld [vmem:[%s1 + $0x10] sm:$0xf]
        %v226 = vld [vmem:[%s1 + $0x14] sm:$0xf]
        %v227 = vld [vmem:[%s1 + $0x18] sm:$0xf]
        %v228 = vld [vmem:[%s1 + $0x1c] sm:$0xf]
        %v229 = vld [vmem:[%s1 + $0x20] sm:$0xf]
        %v230 = vld [vmem:[%s1 + $0x24] sm:$0xf]
        %v231 = vld [vmem:[%s1 + $0x28] sm:$0xf]
        %v232 = vld [vmem:[%s1 + $0x2c] sm:$0xf]
        %v233 = vld [vmem:[%s1 + $0x30] sm:$0xf]
        %v234 = vld [vmem:[%s1 + $0x34] sm:$0xf]
        %v235 = vld [vmem:[%s1 + $0x38] sm:$0xf]
        %v236 = vld [vmem:[%s1 + $0x3c] sm:$0xf]
        %v237 = vld [vmem:[%s1 + $0x40] sm:$0xf]
        %v238 = vld [vmem:[%s1 + $0x44] sm:$0xf]
        %v239 = vld [vmem:[%s1 + $0x48] sm:$0xf]
        %v240 = vld [vmem:[%s1 + $0x4c] sm:$0xf]
        %v241 = vld [vmem:[%s1 + $0x50] sm:$0xf]
        %v242 = vld [vmem:[%s1 + $0x54] sm:$0xf]
        %v243 = vld [vmem:[%s1 + $0x58] sm:$0xf]
        %v244 = vld [vmem:[%s1 + $0x5c] sm:$0xf]
        %v245 = vld [vmem:[%s1 + $0x60] sm:$0xf]
        %v246 = vld [vmem:[%s1 + $0x64] sm:$0xf]
        %v247 = vld [vmem:[%s1 + $0x68] sm:$0xf]
        %v248 = vld [vmem:[%s1 + $0x6c] sm:$0xf]
        %v249 = vld [vmem:[%s1 + $0x70] sm:$0xf]
        %v250 = vld [vmem:[%s1 + $0x74] sm:$0xf]
        %v251 = vld [vmem:[%s1 + $0x78] sm:$0xf]
        %v252 = vld [vmem:[%s1 + $0x7c] sm:$0xf]
        %v253 = vld [vmem:[%s1 + $0x80] sm:$0xf]
        %v254 = vld [vmem:[%s1 + $0x84] sm:$0xf]
        %v255 = vld [vmem:[%s1 + $0x88] sm:$0xf]
        %v256 = vld [vmem:[%s1 + $0x8c] sm:$0xf]
        %v257 = vld [vmem:[%s1 + $0x90] sm:$0xf]
        %v258 = vld [vmem:[%s1 + $0x94] sm:$0xf]
        %v259 = vld [vmem:[%s1 + $0x98] sm:$0xf]
        %v260 = vld [vmem:[%s1 + $0x9c] sm:$0xf]
        %v261 = vld [vmem:[%s1 + $0xa0] sm:$0xf]
        %v262 = vld [vmem:[%s1 + $0xa4] sm:$0xf]
        %v263 = vld [vmem:[%s1 + $0xa8] sm:$0xf]
        %v264 = vld [vmem:[%s1 + $0xac] sm:$0xf]
        %v265 = vld [vmem:[%s1 + $0xb0] sm:$0xf]
        %v266 = vld [vmem:[%s1 + $0xb4] sm:$0xf]
        %v267 = vld [vmem:[%s1 + $0xb8] sm:$0xf]
        %v268 = vld [vmem:[%s1 + $0xbc] sm:$0xf]
        %v269 = vld [vmem:[%s219] sm:$0xf]
        %v318 = vunpack.c.l.b16 %v221
        %v319 = vunpack.c.l.b16 %v222
        %v320 = vunpack.c.l.b16 %v223
        %v321 = vunpack.c.l.b16 %v224
        %v322 = vunpack.c.l.b16 %v225
        %v323 = vunpack.c.l.b16 %v226
        %v324 = vunpack.c.l.b16 %v227
        %v325 = vunpack.c.l.b16 %v228
        %v326 = vunpack.c.l.b16 %v229
        %v327 = vunpack.c.l.b16 %v230
        %v328 = vunpack.c.l.b16 %v231
        %v329 = vunpack.c.l.b16 %v232
        %v330 = vunpack.c.l.b16 %v233
        %v331 = vunpack.c.l.b16 %v234
        %v332 = vunpack.c.l.b16 %v235
        %v333 = vunpack.c.l.b16 %v236
        %v334 = vunpack.c.l.b16 %v237
        %v335 = vunpack.c.l.b16 %v238
        %v336 = vunpack.c.l.b16 %v239
        %v337 = vunpack.c.l.b16 %v240
        %v338 = vunpack.c.l.b16 %v241
        %v339 = vunpack.c.l.b16 %v242
        %v340 = vunpack.c.l.b16 %v243
        %v341 = vunpack.c.l.b16 %v244
        %v342 = vunpack.c.l.b16 %v245
        %v343 = vunpack.c.l.b16 %v246
        %v344 = vunpack.c.l.b16 %v247
        %v345 = vunpack.c.l.b16 %v248
        %v346 = vunpack.c.l.b16 %v249
        %v347 = vunpack.c.l.b16 %v250
        %v348 = vunpack.c.l.b16 %v251
        %v349 = vunpack.c.l.b16 %v252
        %v350 = vunpack.c.l.b16 %v253
        %v351 = vunpack.c.l.b16 %v254
        %v352 = vunpack.c.l.b16 %v255
        %v353 = vunpack.c.l.b16 %v256
        %v354 = vunpack.c.l.b16 %v257
        %v355 = vunpack.c.l.b16 %v258
        %v356 = vunpack.c.l.b16 %v259
        %v357 = vunpack.c.l.b16 %v260
        %v358 = vunpack.c.l.b16 %v261
        %v359 = vunpack.c.l.b16 %v262
        %v360 = vunpack.c.l.b16 %v263
        %v361 = vunpack.c.l.b16 %v264
        %v362 = vunpack.c.l.b16 %v265
        %v363 = vunpack.c.l.b16 %v266
        %v364 = vunpack.c.l.b16 %v267
        %v365 = vunpack.c.l.b16 %v268
        %v366 = vpack.c.b16 %v319, %v318
        %v367 = vpack.c.b16 %v321, %v320
        %v368 = vpack.c.b16 %v323, %v322
        %v369 = vpack.c.b16 %v325, %v324
        %v370 = vpack.c.b16 %v327, %v326
        %v371 = vpack.c.b16 %v329, %v328
        %v372 = vpack.c.b16 %v331, %v330
        %v373 = vpack.c.b16 %v333, %v332
        %v374 = vpack.c.b16 %v335, %v334
        %v375 = vpack.c.b16 %v337, %v336
        %v376 = vpack.c.b16 %v339, %v338
        %v377 = vpack.c.b16 %v341, %v340
        %v378 = vpack.c.b16 %v343, %v342
        %v379 = vpack.c.b16 %v345, %v344
        %v380 = vpack.c.b16 %v347, %v346
        %v381 = vpack.c.b16 %v349, %v348
        %v382 = vpack.c.b16 %v351, %v350
        %v383 = vpack.c.b16 %v353, %v352
        %v384 = vpack.c.b16 %v355, %v354
        %v385 = vpack.c.b16 %v357, %v356
        %v386 = vpack.c.b16 %v359, %v358
        %v387 = vpack.c.b16 %v361, %v360
        %v388 = vpack.c.b16 %v363, %v362
        %v389 = vpack.c.b16 %v365, %v364
        %vm390 = vcmask 64512
        %v392 = vsel %vm390, %v366, 0
        %v395 = vsel %vm390, %v367, 0
        %v398 = vsel %vm390, %v368, 0
        %v401 = vsel %vm390, %v369, 0
        %v404 = vsel %vm390, %v370, 0
        %v407 = vsel %vm390, %v371, 0
        %v410 = vsel %vm390, %v372, 0
        %v413 = vsel %vm390, %v373, 0
        %v416 = vsel %vm390, %v374, 0
        %v419 = vsel %vm390, %v375, 0
        %v422 = vsel %vm390, %v376, 0
        %v425 = vsel %vm390, %v377, 0
        %v428 = vsel %vm390, %v378, 0
        %v431 = vsel %vm390, %v379, 0
        %v434 = vsel %vm390, %v380, 0
        %v437 = vsel %vm390, %v381, 0
        %v440 = vsel %vm390, %v382, 0
        %v443 = vsel %vm390, %v383, 0
        %v446 = vsel %vm390, %v384, 0
        %v449 = vsel %vm390, %v385, 0
        %v452 = vsel %vm390, %v386, 0
        %v455 = vsel %vm390, %v387, 0
        %v458 = vsel %vm390, %v388, 0
        %v461 = vsel %vm390, %v389, 0
        %vm463 = vcmask 1043456
        %v465 = vsel %vm463, %v269, 0
        %467 = vmatprep.subr.bf16.mxu0 0
        %468 = vmatpush1.bf16.msra.mxu0 %v465
        %469 = vmatprep.subr.bf16.mxu0 0
        %470 = vmatpush1.bf16.msra.mxu0 0
        %471 = vmatprep.subr.bf16.mxu0 0
        %472 = vmatpush1.bf16.msra.mxu0 0
        %473 = vmatprep.subr.bf16.mxu0 0
        %474 = vmatpush1.bf16.msra.mxu0 0
        %475 = vmatprep.subr.bf16.mxu0 0
        %476 = vmatpush1.bf16.msra.mxu0 0
        %477 = vmatprep.subr.bf16.mxu0 0
        %478 = vmatpush1.bf16.msra.mxu0 0
        %479 = vmatprep.subr.bf16.mxu0 0
        %480 = vmatpush1.bf16.msra.mxu0 0
        %481 = vmatprep.subr.bf16.mxu0 0
        %482 = vmatpush1.bf16.msra.mxu0 0
        %483 = vmatprep.subr.bf16.mxu0 0
        %484 = vmatpush1.bf16.msra.mxu0 0
        %485 = vmatprep.subr.bf16.mxu0 0
        %486 = vmatpush1.bf16.msra.mxu0 0
        %487 = vmatprep.subr.bf16.mxu0 0
        %488 = vmatpush1.bf16.msra.mxu0 0
        %489 = vmatprep.subr.bf16.mxu0 0
        %490 = vmatpush1.bf16.msra.mxu0 0
        %491 = vmatprep.subr.bf16.mxu0 0
        %492 = vmatpush1.bf16.msra.mxu0 0
        %493 = vmatprep.subr.bf16.mxu0 0
        %494 = vmatpush1.bf16.msra.mxu0 0
        %495 = vmatprep.subr.bf16.mxu0 0
        %496 = vmatpush1.bf16.msra.mxu0 0
        %497 = vmatprep.subr.bf16.mxu0 0
        %498 = vmatpush1.bf16.msra.mxu0 0
        %499 = vmatprep.mubr.bf16.mxu0 0
        %500 = vmatmul.mubr.bf16.gmra.mrb[0].mxu0 %v392
        %v501 = vpop.f32.mrb[0].mxu0
        %v502 = vadd.f32 0.0, %v501
        %v503 = vpop.f32.mrb[0].mxu0
        %v504 = vpop.f32.mrb[0].mxu0
        %v505 = vadd.f32 0.0, %v504
        %v506 = vpop.f32.mrb[0].mxu0
        %507 = vmatprep.mubr.bf16.mxu0 0
        %508 = vmatmul.mubr.bf16.gmra.mrb[0].mxu0 %v395
        %v509 = vpop.f32.mrb[0].mxu0
        %v510 = vadd.f32 0.0, %v509
        %v511 = vpop.f32.mrb[0].mxu0
        %v512 = vpop.f32.mrb[0].mxu0
        %v513 = vadd.f32 0.0, %v512
        %v514 = vpop.f32.mrb[0].mxu0
        %515 = vmatprep.mubr.bf16.mxu0 0
        %516 = vmatmul.mubr.bf16.gmra.mrb[0].mxu0 %v398
        %v517 = vpop.f32.mrb[0].mxu0
        %v518 = vadd.f32 0.0, %v517
        %v519 = vpop.f32.mrb[0].mxu0
        %v520 = vpop.f32.mrb[0].mxu0
        %v521 = vadd.f32 0.0, %v520
        %v522 = vpop.f32.mrb[0].mxu0
        %523 = vmatprep.mubr.bf16.mxu0 0
        %524 = vmatmul.mubr.bf16.gmra.mrb[0].mxu0 %v401
        %v525 = vpop.f32.mrb[0].mxu0
        %v526 = vadd.f32 0.0, %v525
        %v527 = vpop.f32.mrb[0].mxu0
        %v528 = vpop.f32.mrb[0].mxu0
        %v529 = vadd.f32 0.0, %v528
        %v530 = vpop.f32.mrb[0].mxu0
        %531 = vmatprep.mubr.bf16.mxu0 0
        %532 = vmatmul.mubr.bf16.gmra.mrb[0].mxu0 %v404
        %v533 = vpop.f32.mrb[0].mxu0
        %v534 = vadd.f32 0.0, %v533
        %v535 = vpop.f32.mrb[0].mxu0
        %v536 = vpop.f32.mrb[0].mxu0
        %v537 = vadd.f32 0.0, %v536
        %v538 = vpop.f32.mrb[0].mxu0
        %539 = vmatprep.mubr.bf16.mxu0 0
        %540 = vmatmul.mubr.bf16.gmra.mrb[0].mxu0 %v407
        %v541 = vpop.f32.mrb[0].mxu0
        %v542 = vadd.f32 0.0, %v541
        %v543 = vpop.f32.mrb[0].mxu0
        %v544 = vpop.f32.mrb[0].mxu0
        %v545 = vadd.f32 0.0, %v544
        %v546 = vpop.f32.mrb[0].mxu0
        %547 = vmatprep.mubr.bf16.mxu0 0
        %548 = vmatmul.mubr.bf16.gmra.mrb[0].mxu0 %v410
        %v549 = vpop.f32.mrb[0].mxu0
        %v550 = vadd.f32 0.0, %v549
        %v551 = vpop.f32.mrb[0].mxu0
        %v552 = vpop.f32.mrb[0].mxu0
        %v553 = vadd.f32 0.0, %v552
        %v554 = vpop.f32.mrb[0].mxu0
        %555 = vmatprep.mubr.bf16.mxu0 0
        %556 = vmatmul.mubr.bf16.gmra.mrb[0].mxu0 %v413
        %v557 = vpop.f32.mrb[0].mxu0
        %v558 = vadd.f32 0.0, %v557
        %v559 = vpop.f32.mrb[0].mxu0
        %v560 = vpop.f32.mrb[0].mxu0
        %v561 = vadd.f32 0.0, %v560
        %v562 = vpop.f32.mrb[0].mxu0
        %563 = vmatprep.mubr.bf16.mxu0 0
        %564 = vmatmul.mubr.bf16.gmra.mrb[0].mxu0 %v416
        %v565 = vpop.f32.mrb[0].mxu0
        %v566 = vadd.f32 0.0, %v565
        %v567 = vpop.f32.mrb[0].mxu0
        %v568 = vpop.f32.mrb[0].mxu0
        %v569 = vadd.f32 0.0, %v568
        %v570 = vpop.f32.mrb[0].mxu0
        %571 = vmatprep.mubr.bf16.mxu0 0
        %572 = vmatmul.mubr.bf16.gmra.mrb[0].mxu0 %v419
        %v573 = vpop.f32.mrb[0].mxu0
        %v574 = vadd.f32 0.0, %v573
        %v575 = vpop.f32.mrb[0].mxu0
        %v576 = vpop.f32.mrb[0].mxu0
        %v577 = vadd.f32 0.0, %v576
        %v578 = vpop.f32.mrb[0].mxu0
        %579 = vmatprep.mubr.bf16.mxu0 0
        %580 = vmatmul.mubr.bf16.gmra.mrb[0].mxu0 %v422
        %v581 = vpop.f32.mrb[0].mxu0
        %v582 = vadd.f32 0.0, %v581
        %v583 = vpop.f32.mrb[0].mxu0
        %v584 = vpop.f32.mrb[0].mxu0
        %v585 = vadd.f32 0.0, %v584
        %v586 = vpop.f32.mrb[0].mxu0
        %587 = vmatprep.mubr.bf16.mxu0 0
        %588 = vmatmul.mubr.bf16.gmra.mrb[0].mxu0 %v425
        %v589 = vpop.f32.mrb[0].mxu0
        %v590 = vadd.f32 0.0, %v589
        %v591 = vpop.f32.mrb[0].mxu0
        %v592 = vpop.f32.mrb[0].mxu0
        %v593 = vadd.f32 0.0, %v592
        %v594 = vpop.f32.mrb[0].mxu0
        %595 = vmatprep.mubr.bf16.mxu0 0
        %596 = vmatmul.mubr.bf16.gmra.mrb[0].mxu0 %v428
        %v597 = vpop.f32.mrb[0].mxu0
        %v598 = vadd.f32 0.0, %v597
        %v599 = vpop.f32.mrb[0].mxu0
        %v600 = vpop.f32.mrb[0].mxu0
        %v601 = vadd.f32 0.0, %v600
        %v602 = vpop.f32.mrb[0].mxu0
        %603 = vmatprep.mubr.bf16.mxu0 0
        %604 = vmatmul.mubr.bf16.gmra.mrb[0].mxu0 %v431
        %v605 = vpop.f32.mrb[0].mxu0
        %v606 = vadd.f32 0.0, %v605
        %v607 = vpop.f32.mrb[0].mxu0
        %v608 = vpop.f32.mrb[0].mxu0
        %v609 = vadd.f32 0.0, %v608
        %v610 = vpop.f32.mrb[0].mxu0
        %611 = vmatprep.mubr.bf16.mxu0 0
        %612 = vmatmul.mubr.bf16.gmra.mrb[0].mxu0 %v434
        %v613 = vpop.f32.mrb[0].mxu0
        %v614 = vadd.f32 0.0, %v613
        %v615 = vpop.f32.mrb[0].mxu0
        %v616 = vpop.f32.mrb[0].mxu0
        %v617 = vadd.f32 0.0, %v616
        %v618 = vpop.f32.mrb[0].mxu0
        %619 = vmatprep.mubr.bf16.mxu0 0
        %620 = vmatmul.mubr.bf16.gmra.mrb[0].mxu0 %v437
        %v621 = vpop.f32.mrb[0].mxu0
        %v622 = vadd.f32 0.0, %v621
        %v623 = vpop.f32.mrb[0].mxu0
        %v624 = vpop.f32.mrb[0].mxu0
        %v625 = vadd.f32 0.0, %v624
        %v626 = vpop.f32.mrb[0].mxu0
        %627 = vmatprep.mubr.bf16.mxu0 0
        %628 = vmatmul.mubr.bf16.gmra.mrb[0].mxu0 %v440
        %v629 = vpop.f32.mrb[0].mxu0
        %v630 = vadd.f32 0.0, %v629
        %v631 = vpop.f32.mrb[0].mxu0
        %v632 = vpop.f32.mrb[0].mxu0
        %v633 = vadd.f32 0.0, %v632
        %v634 = vpop.f32.mrb[0].mxu0
        %635 = vmatprep.mubr.bf16.mxu0 0
        %636 = vmatmul.mubr.bf16.gmra.mrb[0].mxu0 %v443
        %v637 = vpop.f32.mrb[0].mxu0
        %v638 = vadd.f32 0.0, %v637
        %v639 = vpop.f32.mrb[0].mxu0
        %v640 = vpop.f32.mrb[0].mxu0
        %v641 = vadd.f32 0.0, %v640
        %v642 = vpop.f32.mrb[0].mxu0
        %643 = vmatprep.mubr.bf16.mxu0 0
        %644 = vmatmul.mubr.bf16.gmra.mrb[0].mxu0 %v446
        %v645 = vpop.f32.mrb[0].mxu0
        %v646 = vadd.f32 0.0, %v645
        %v647 = vpop.f32.mrb[0].mxu0
        %v648 = vpop.f32.mrb[0].mxu0
        %v649 = vadd.f32 0.0, %v648
        %v650 = vpop.f32.mrb[0].mxu0
        %651 = vmatprep.mubr.bf16.mxu0 0
        %652 = vmatmul.mubr.bf16.gmra.mrb[0].mxu0 %v449
        %v653 = vpop.f32.mrb[0].mxu0
        %v654 = vadd.f32 0.0, %v653
        %v655 = vpop.f32.mrb[0].mxu0
        %v656 = vpop.f32.mrb[0].mxu0
        %v657 = vadd.f32 0.0, %v656
        %v658 = vpop.f32.mrb[0].mxu0
        %659 = vmatprep.mubr.bf16.mxu0 0
        %660 = vmatmul.mubr.bf16.gmra.mrb[0].mxu0 %v452
        %v661 = vpop.f32.mrb[0].mxu0
        %v662 = vadd.f32 0.0, %v661
        %v663 = vpop.f32.mrb[0].mxu0
        %v664 = vpop.f32.mrb[0].mxu0
        %v665 = vadd.f32 0.0, %v664
        %v666 = vpop.f32.mrb[0].mxu0
        %667 = vmatprep.mubr.bf16.mxu0 0
        %668 = vmatmul.mubr.bf16.gmra.mrb[0].mxu0 %v455
        %v669 = vpop.f32.mrb[0].mxu0
        %v670 = vadd.f32 0.0, %v669
        %v671 = vpop.f32.mrb[0].mxu0
        %v672 = vpop.f32.mrb[0].mxu0
        %v673 = vadd.f32 0.0, %v672
        %v674 = vpop.f32.mrb[0].mxu0
        %675 = vmatprep.mubr.bf16.mxu0 0
        %676 = vmatmul.mubr.bf16.gmra.mrb[0].mxu0 %v458
        %v677 = vpop.f32.mrb[0].mxu0
        %v678 = vadd.f32 0.0, %v677
        %v679 = vpop.f32.mrb[0].mxu0
        %v680 = vpop.f32.mrb[0].mxu0
        %v681 = vadd.f32 0.0, %v680
        %v682 = vpop.f32.mrb[0].mxu0
        %683 = vmatprep.mubr.bf16.mxu0 0
        %684 = vmatmul.mubr.bf16.gmra.mrb[0].mxu0 %v461
        %v685 = vpop.f32.mrb[0].mxu0
        %v686 = vadd.f32 0.0, %v685
        %v687 = vpop.f32.mrb[0].mxu0
        %v688 = vpop.f32.mrb[0].mxu0
        %v689 = vadd.f32 0.0, %v688
        %v690 = vpop.f32.mrb[0].mxu0
        %691 = vdwg.mxu0
        %vm692 = vcmask 130048
        %v693 = vsel %vm692, %v502, -inf
        %v694 = vsel %vm692, %v505, -inf
        %v695 = vsel %vm692, %v510, -inf
        %v696 = vsel %vm692, %v513, -inf
        %v697 = vmax.f32 %v693, %v694
        %v698 = vmax.f32 %v695, %v696
        %v699 = vmax.f32 %v697, %v698
        %v700 = vrot.slane %v699, 4
        %v701 = vmax.f32 %v699, %v700
        %v702 = vrot.slane %v701, 2
        %v703 = vmax.f32 %v701, %v702
        %v704 = vrot.slane %v703, 1
        %v705 = vmax.f32 %v703, %v704
        %v706 = vsub.f32 %v502, %v705
        %v707 = vsub.f32 %v505, %v705
        %v708 = vsub.f32 %v510, %v705
        %v709 = vsub.f32 %v513, %v705
        %v710 = vmul.f32 %v706, 1.442695
        %v711 = vpow.pop %v710
        %v712 = vmul.f32 %v707, 1.442695
        %v713 = vpow.pop %v712
        %v714 = vmul.f32 %v708, 1.442695
        %v715 = vpow.pop %v714
        %v716 = vmul.f32 %v709, 1.442695
        %v717 = vpow.pop %v716
        %v718 = vsel %vm692, %v711, 0.0
        %v719 = vsel %vm692, %v713, 0.0
        %v720 = vadd.f32 %v718, %v719
        %v721 = vsel %vm692, %v715, 0.0
        %v722 = vadd.f32 %v720, %v721
        %v723 = vsel %vm692, %v717, 0.0
        %v724 = vadd.f32 %v722, %v723
        %v725 = vrot.slane %v724, 4
        %v726 = vadd.f32 %v724, %v725
        %v727 = vrot.slane %v726, 2
        %v728 = vadd.f32 %v726, %v727
        %v729 = vrot.slane %v728, 1
        %v730 = vadd.f32 %v728, %v729
        %v731 = vrcp.pop %v730
        %v732 = vmul.f32 %v711, %v731
        %v733 = vmul.f32 %v713, %v731
        %v734 = vmul.f32 %v715, %v731
        %v735 = vmul.f32 %v717, %v731
        %v736 = vpack.c.bf16 %v733, %v732
        %v737 = vpack.c.bf16 %v735, %v734
        %v738 = vsel %vm692, %v566, -inf
        %739 = vmax.xlane.f32.xlu0 %v738
        %v740 = vpop.xlane.xlu0 %739
        %v741 = vsel %vm692, %v569, -inf
        %742 = vmax.xlane.f32.xlu0 %v741
        %v743 = vpop.xlane.xlu0 %742
        %v744 = vsel %vm692, %v574, -inf
        %745 = vmax.xlane.f32.xlu0 %v744
        %v746 = vpop.xlane.xlu0 %745
        %v747 = vsel %vm692, %v577, -inf
        %748 = vmax.xlane.f32.xlu0 %v747
        %v749 = vpop.xlane.xlu0 %748
        %v750 = vsub.f32 %v566, %v740
        %v751 = vsub.f32 %v569, %v743
        %v752 = vsub.f32 %v574, %v746
        %v753 = vsub.f32 %v577, %v749
        %v754 = vmul.f32 %v750, 1.442695
        %v755 = vpow.pop %v754
        %v756 = vmul.f32 %v751, 1.442695
        %v757 = vpow.pop %v756
        %v758 = vmul.f32 %v752, 1.442695
        %v759 = vpow.pop %v758
        %v760 = vmul.f32 %v753, 1.442695
        %v761 = vpow.pop %v760
        %v762 = vsel %vm692, %v755, 0.0
        %763 = vadd.xlane.f32.xlu0 %v762
        %v764 = vpop.xlane.xlu0 %763
        %v765 = vsel %vm692, %v757, 0.0
        %766 = vadd.xlane.f32.xlu0 %v765
        %v767 = vpop.xlane.xlu0 %766
        %v768 = vsel %vm692, %v759, 0.0
        %769 = vadd.xlane.f32.xlu0 %v768
        %v770 = vpop.xlane.xlu0 %769
        %v771 = vsel %vm692, %v761, 0.0
        %772 = vadd.xlane.f32.xlu0 %v771
        %v773 = vpop.xlane.xlu0 %772
        %v774 = vrcp.pop %v764
        %v775 = vrcp.pop %v767
        %v776 = vrcp.pop %v770
        %v777 = vrcp.pop %v773
        %v778 = vmul.f32 %v755, %v774
        %v779 = vmul.f32 %v757, %v775
        %v780 = vmul.f32 %v759, %v776
        %v781 = vmul.f32 %v761, %v777
        %v782 = vpack.c.bf16 %v779, %v778
        %v783 = vpack.c.bf16 %v781, %v780
        %v784 = vpack.c.bf16 %v633, %v630
        %v785 = vpack.c.bf16 %v641, %v638
        %v787 = vsel %vm692, %v784, 0
        %v790 = vsel %vm692, %v785, 0
        %v793 = vsel %vm692, %v782, 0
        %v796 = vsel %vm692, %v783, 0
        %798 = vmatprep.subr.bf16.mxu0 0
        %799 = vmatpush1.bf16.xpose.msra.mxu0 %v793
        %800 = vmatprep.subr.bf16.mxu0 0
        %801 = vmatpush1.bf16.xpose.msra.mxu0 %v796
        %802 = vmatprep.subr.bf16.mxu0 0
        %803 = vmatpush1.bf16.xpose.msra.mxu0 0
        %804 = vmatprep.subr.bf16.mxu0 0
        %805 = vmatpush1.bf16.xpose.msra.mxu0 0
        %806 = vmatprep.subr.bf16.mxu0 0
        %807 = vmatpush1.bf16.xpose.msra.mxu0 0
        %808 = vmatprep.subr.bf16.mxu0 0
        %809 = vmatpush1.bf16.xpose.msra.mxu0 0
        %810 = vmatprep.subr.bf16.mxu0 0
        %811 = vmatpush1.bf16.xpose.msra.mxu0 0
        %812 = vmatprep.subr.bf16.mxu0 0
        %813 = vmatpush1.bf16.xpose.msra.mxu0 0
        %814 = vmatprep.subr.bf16.mxu0 0
        %815 = vmatpush1.bf16.xpose.msra.mxu0 0
        %816 = vmatprep.subr.bf16.mxu0 0
        %817 = vmatpush1.bf16.xpose.msra.mxu0 0
        %818 = vmatprep.subr.bf16.mxu0 0
        %819 = vmatpush1.bf16.xpose.msra.mxu0 0
        %820 = vmatprep.subr.bf16.mxu0 0
        %821 = vmatpush1.bf16.xpose.msra.mxu0 0
        %822 = vmatprep.subr.bf16.mxu0 0
        %823 = vmatpush1.bf16.xpose.msra.mxu0 0
        %824 = vmatprep.subr.bf16.mxu0 0
        %825 = vmatpush1.bf16.xpose.msra.mxu0 0
        %826 = vmatprep.subr.bf16.mxu0 0
        %827 = vmatpush1.bf16.xpose.msra.mxu0 0
        %828 = vmatprep.subr.bf16.mxu0 0
        %829 = vmatpush1.bf16.xpose.msra.mxu0 0
        %830 = vmatprep.mubr.bf16.mxu0 0
        %831 = vmatmul.mubr.bf16.gmra.mrb[0].mxu0 %v787
        %v832 = vpop.f32.mrb[0].mxu0
        %v833 = vadd.f32 0.0, %v832
        %v834 = vpop.f32.mrb[0].mxu0
        %v835 = vpop.f32.mrb[0].mxu0
        %v836 = vadd.f32 0.0, %v835
        %v837 = vpop.f32.mrb[0].mxu0
        %838 = vmatprep.mubr.bf16.mxu0 0
        %839 = vmatmul.mubr.bf16.gmra.mrb[0].mxu0 %v790
        %v840 = vpop.f32.mrb[0].mxu0
        %v841 = vadd.f32 0.0, %v840
        %v842 = vpop.f32.mrb[0].mxu0
        %v843 = vpop.f32.mrb[0].mxu0
        %v844 = vadd.f32 0.0, %v843
        %v845 = vpop.f32.mrb[0].mxu0
        %846 = vdwg.mxu0
        %v847 = vpack.c.bf16 %v836, %v833
        %v848 = vpack.c.bf16 %v844, %v841
        %vm849 = vcmask 261120
        %v851 = vsel %vm849, %v847, 0
        %v854 = vsel %vm849, %v848, 0
        %856 = vmatprep.subr.bf16.mxu0 0
        %857 = vmatpush1.bf16.msra.mxu0 %v736
        %858 = vmatprep.subr.bf16.mxu0 0
        %859 = vmatpush1.bf16.msra.mxu0 %v737
        %860 = vmatprep.subr.bf16.mxu0 0
        %861 = vmatpush1.bf16.msra.mxu0 0
        %862 = vmatprep.subr.bf16.mxu0 0
        %863 = vmatpush1.bf16.msra.mxu0 0
        %864 = vmatprep.subr.bf16.mxu0 0
        %865 = vmatpush1.bf16.msra.mxu0 0
        %866 = vmatprep.subr.bf16.mxu0 0
        %867 = vmatpush1.bf16.msra.mxu0 0
        %868 = vmatprep.subr.bf16.mxu0 0
        %869 = vmatpush1.bf16.msra.mxu0 0
        %870 = vmatprep.subr.bf16.mxu0 0
        %871 = vmatpush1.bf16.msra.mxu0 0
        %872 = vmatprep.subr.bf16.mxu0 0
        %873 = vmatpush1.bf16.msra.mxu0 0
        %874 = vmatprep.subr.bf16.mxu0 0
        %875 = vmatpush1.bf16.msra.mxu0 0
        %876 = vmatprep.subr.bf16.mxu0 0
        %877 = vmatpush1.bf16.msra.mxu0 0
        %878 = vmatprep.subr.bf16.mxu0 0
        %879 = vmatpush1.bf16.msra.mxu0 0
        %880 = vmatprep.subr.bf16.mxu0 0
        %881 = vmatpush1.bf16.msra.mxu0 0
        %882 = vmatprep.subr.bf16.mxu0 0
        %883 = vmatpush1.bf16.msra.mxu0 0
        %884 = vmatprep.subr.bf16.mxu0 0
        %885 = vmatpush1.bf16.msra.mxu0 0
        %886 = vmatprep.subr.bf16.mxu0 0
        %887 = vmatpush1.bf16.msra.mxu0 0
        %888 = vmatprep.mubr.bf16.mxu0 0
        %889 = vmatmul.mubr.bf16.gmra.mrb[0].mxu0 %v851
        %v890 = vpop.f32.mrb[0].mxu0
        %v891 = vadd.f32 0.0, %v890
        %v892 = vpop.f32.mrb[0].mxu0
        %v893 = vpop.f32.mrb[0].mxu0
        %v894 = vadd.f32 0.0, %v893
        %v895 = vpop.f32.mrb[0].mxu0
        %896 = vmatprep.mubr.bf16.mxu0 0
        %897 = vmatmul.mubr.bf16.gmra.mrb[0].mxu0 %v854
        %v898 = vpop.f32.mrb[0].mxu0
        %v899 = vadd.f32 0.0, %v898
        %v900 = vpop.f32.mrb[0].mxu0
        %v901 = vpop.f32.mrb[0].mxu0
        %v902 = vadd.f32 0.0, %v901
        %v903 = vpop.f32.mrb[0].mxu0
        %904 = vdwg.mxu0
        %v905 = vld [vmem:[%s2] sm:$0xf]
        %v906 = vpack.c.bf16 %v894, %v891
        %v907 = vpack.c.bf16 %v902, %v899
        %v908 = vsel %vm692, %v518, -inf
        %v909 = vsel %vm692, %v521, -inf
        %v910 = vsel %vm692, %v526, -inf
        %v911 = vsel %vm692, %v529, -inf
        %v912 = vmax.f32 %v908, %v909
        %v913 = vmax.f32 %v910, %v911
        %v914 = vmax.f32 %v912, %v913
        %v915 = vrot.slane %v914, 4
        %v916 = vmax.f32 %v914, %v915
        %v917 = vrot.slane %v916, 2
        %v918 = vmax.f32 %v916, %v917
        %v919 = vrot.slane %v918, 1
        %v920 = vmax.f32 %v918, %v919
        %v921 = vsub.f32 %v518, %v920
        %v922 = vsub.f32 %v521, %v920
        %v923 = vsub.f32 %v526, %v920
        %v924 = vsub.f32 %v529, %v920
        %v925 = vmul.f32 %v921, 1.442695
        %v926 = vpow.pop %v925
        %v927 = vmul.f32 %v922, 1.442695
        %v928 = vpow.pop %v927
        %v929 = vmul.f32 %v923, 1.442695
        %v930 = vpow.pop %v929
        %v931 = vmul.f32 %v924, 1.442695
        %v932 = vpow.pop %v931
        %v933 = vsel %vm692, %v926, 0.0
        %v934 = vsel %vm692, %v928, 0.0
        %v935 = vadd.f32 %v933, %v934
        %v936 = vsel %vm692, %v930, 0.0
        %v937 = vadd.f32 %v935, %v936
        %v938 = vsel %vm692, %v932, 0.0
        %v939 = vadd.f32 %v937, %v938
        %v940 = vrot.slane %v939, 4
        %v941 = vadd.f32 %v939, %v940
        %v942 = vrot.slane %v941, 2
        %v943 = vadd.f32 %v941, %v942
        %v944 = vrot.slane %v943, 1
        %v945 = vadd.f32 %v943, %v944
        %v946 = vrcp.pop %v945
        %v947 = vmul.f32 %v926, %v946
        %v948 = vmul.f32 %v928, %v946
        %v949 = vmul.f32 %v930, %v946
        %v950 = vmul.f32 %v932, %v946
        %v951 = vpack.c.bf16 %v948, %v947
        %v952 = vpack.c.bf16 %v950, %v949
        %v953 = vsel %vm692, %v582, -inf
        %954 = vmax.xlane.f32.xlu0 %v953
        %v955 = vpop.xlane.xlu0 %954
        %v956 = vsel %vm692, %v585, -inf
        %957 = vmax.xlane.f32.xlu0 %v956
        %v958 = vpop.xlane.xlu0 %957
        %v959 = vsel %vm692, %v590, -inf
        %960 = vmax.xlane.f32.xlu0 %v959
        %v961 = vpop.xlane.xlu0 %960
        %v962 = vsel %vm692, %v593, -inf
        %963 = vmax.xlane.f32.xlu0 %v962
        %v964 = vpop.xlane.xlu0 %963
        %v965 = vsub.f32 %v582, %v955
        %v966 = vsub.f32 %v585, %v958
        %v967 = vsub.f32 %v590, %v961
        %v968 = vsub.f32 %v593, %v964
        %v969 = vmul.f32 %v965, 1.442695
        %v970 = vpow.pop %v969
        %v971 = vmul.f32 %v966, 1.442695
        %v972 = vpow.pop %v971
        %v973 = vmul.f32 %v967, 1.442695
        %v974 = vpow.pop %v973
        %v975 = vmul.f32 %v968, 1.442695
        %v976 = vpow.pop %v975
        %v977 = vsel %vm692, %v970, 0.0
        %978 = vadd.xlane.f32.xlu0 %v977
        %v979 = vpop.xlane.xlu0 %978
        %v980 = vsel %vm692, %v972, 0.0
        %981 = vadd.xlane.f32.xlu0 %v980
        %v982 = vpop.xlane.xlu0 %981
        %v983 = vsel %vm692, %v974, 0.0
        %984 = vadd.xlane.f32.xlu0 %v983
        %v985 = vpop.xlane.xlu0 %984
        %v986 = vsel %vm692, %v976, 0.0
        %987 = vadd.xlane.f32.xlu0 %v986
        %v988 = vpop.xlane.xlu0 %987
        %v989 = vrcp.pop %v979
        %v990 = vrcp.pop %v982
        %v991 = vrcp.pop %v985
        %v992 = vrcp.pop %v988
        %v993 = vmul.f32 %v970, %v989
        %v994 = vmul.f32 %v972, %v990
        %v995 = vmul.f32 %v974, %v991
        %v996 = vmul.f32 %v976, %v992
        %v997 = vpack.c.bf16 %v994, %v993
        %v998 = vpack.c.bf16 %v996, %v995
        %v999 = vpack.c.bf16 %v649, %v646
        %v1000 = vpack.c.bf16 %v657, %v654
        %v1002 = vsel %vm692, %v999, 0
        %v1005 = vsel %vm692, %v1000, 0
        %v1008 = vsel %vm692, %v997, 0
        %v1011 = vsel %vm692, %v998, 0
        %1013 = vmatprep.subr.bf16.mxu0 0
        %1014 = vmatpush1.bf16.xpose.msra.mxu0 %v1008
        %1015 = vmatprep.subr.bf16.mxu0 0
        %1016 = vmatpush1.bf16.xpose.msra.mxu0 %v1011
        %1017 = vmatprep.subr.bf16.mxu0 0
        %1018 = vmatpush1.bf16.xpose.msra.mxu0 0
        %1019 = vmatprep.subr.bf16.mxu0 0
        %1020 = vmatpush1.bf16.xpose.msra.mxu0 0
        %1021 = vmatprep.subr.bf16.mxu0 0
        %1022 = vmatpush1.bf16.xpose.msra.mxu0 0
        %1023 = vmatprep.subr.bf16.mxu0 0
        %1024 = vmatpush1.bf16.xpose.msra.mxu0 0
        %1025 = vmatprep.subr.bf16.mxu0 0
        %1026 = vmatpush1.bf16.xpose.msra.mxu0 0
        %1027 = vmatprep.subr.bf16.mxu0 0
        %1028 = vmatpush1.bf16.xpose.msra.mxu0 0
        %1029 = vmatprep.subr.bf16.mxu0 0
        %1030 = vmatpush1.bf16.xpose.msra.mxu0 0
        %1031 = vmatprep.subr.bf16.mxu0 0
        %1032 = vmatpush1.bf16.xpose.msra.mxu0 0
        %1033 = vmatprep.subr.bf16.mxu0 0
        %1034 = vmatpush1.bf16.xpose.msra.mxu0 0
        %1035 = vmatprep.subr.bf16.mxu0 0
        %1036 = vmatpush1.bf16.xpose.msra.mxu0 0
        %1037 = vmatprep.subr.bf16.mxu0 0
        %1038 = vmatpush1.bf16.xpose.msra.mxu0 0
        %1039 = vmatprep.subr.bf16.mxu0 0
        %1040 = vmatpush1.bf16.xpose.msra.mxu0 0
        %1041 = vmatprep.subr.bf16.mxu0 0
        %1042 = vmatpush1.bf16.xpose.msra.mxu0 0
        %1043 = vmatprep.subr.bf16.mxu0 0
        %1044 = vmatpush1.bf16.xpose.msra.mxu0 0
        %1045 = vmatprep.mubr.bf16.mxu0 0
        %1046 = vmatmul.mubr.bf16.gmra.mrb[0].mxu0 %v1002
        %v1047 = vpop.f32.mrb[0].mxu0
        %v1048 = vadd.f32 0.0, %v1047
        %v1049 = vpop.f32.mrb[0].mxu0
        %v1050 = vpop.f32.mrb[0].mxu0
        %v1051 = vadd.f32 0.0, %v1050
        %v1052 = vpop.f32.mrb[0].mxu0
        %1053 = vmatprep.mubr.bf16.mxu0 0
        %1054 = vmatmul.mubr.bf16.gmra.mrb[0].mxu0 %v1005
        %v1055 = vpop.f32.mrb[0].mxu0
        %v1056 = vadd.f32 0.0, %v1055
        %v1057 = vpop.f32.mrb[0].mxu0
        %v1058 = vpop.f32.mrb[0].mxu0
        %v1059 = vadd.f32 0.0, %v1058
        %v1060 = vpop.f32.mrb[0].mxu0
        %1061 = vdwg.mxu0
        %v1062 = vpack.c.bf16 %v1051, %v1048
        %v1063 = vpack.c.bf16 %v1059, %v1056
        %v1065 = vsel %vm849, %v1062, 0
        %v1068 = vsel %vm849, %v1063, 0
        %1070 = vmatprep.subr.bf16.mxu0 0
        %1071 = vmatpush1.bf16.msra.mxu0 %v951
        %1072 = vmatprep.subr.bf16.mxu0 0
        %1073 = vmatpush1.bf16.msra.mxu0 %v952
        %1074 = vmatprep.subr.bf16.mxu0 0
        %1075 = vmatpush1.bf16.msra.mxu0 0
        %1076 = vmatprep.subr.bf16.mxu0 0
        %1077 = vmatpush1.bf16.msra.mxu0 0
        %1078 = vmatprep.subr.bf16.mxu0 0
        %1079 = vmatpush1.bf16.msra.mxu0 0
        %1080 = vmatprep.subr.bf16.mxu0 0
        %1081 = vmatpush1.bf16.msra.mxu0 0
        %1082 = vmatprep.subr.bf16.mxu0 0
        %1083 = vmatpush1.bf16.msra.mxu0 0
        %1084 = vmatprep.subr.bf16.mxu0 0
        %1085 = vmatpush1.bf16.msra.mxu0 0
        %1086 = vmatprep.subr.bf16.mxu0 0
        %1087 = vmatpush1.bf16.msra.mxu0 0
        %1088 = vmatprep.subr.bf16.mxu0 0
        %1089 = vmatpush1.bf16.msra.mxu0 0
        %1090 = vmatprep.subr.bf16.mxu0 0
        %1091 = vmatpush1.bf16.msra.mxu0 0
        %1092 = vmatprep.subr.bf16.mxu0 0
        %1093 = vmatpush1.bf16.msra.mxu0 0
        %1094 = vmatprep.subr.bf16.mxu0 0
        %1095 = vmatpush1.bf16.msra.mxu0 0
        %1096 = vmatprep.subr.bf16.mxu0 0
        %1097 = vmatpush1.bf16.msra.mxu0 0
        %1098 = vmatprep.subr.bf16.mxu0 0
        %1099 = vmatpush1.bf16.msra.mxu0 0
        %1100 = vmatprep.subr.bf16.mxu0 0
        %1101 = vmatpush1.bf16.msra.mxu0 0
        %1102 = vmatprep.mubr.bf16.mxu0 0
        %1103 = vmatmul.mubr.bf16.gmra.mrb[0].mxu0 %v1065
        %v1104 = vpop.f32.mrb[0].mxu0
        %v1105 = vadd.f32 0.0, %v1104
        %v1106 = vpop.f32.mrb[0].mxu0
        %v1107 = vpop.f32.mrb[0].mxu0
        %v1108 = vadd.f32 0.0, %v1107
        %v1109 = vpop.f32.mrb[0].mxu0
        %1110 = vmatprep.mubr.bf16.mxu0 0
        %1111 = vmatmul.mubr.bf16.gmra.mrb[0].mxu0 %v1068
        %v1112 = vpop.f32.mrb[0].mxu0
        %v1113 = vadd.f32 0.0, %v1112
        %v1114 = vpop.f32.mrb[0].mxu0
        %v1115 = vpop.f32.mrb[0].mxu0
        %v1116 = vadd.f32 0.0, %v1115
        %v1117 = vpop.f32.mrb[0].mxu0
        %1118 = vdwg.mxu0
        %v1119 = vpack.c.bf16 %v1108, %v1105
        %v1120 = vpack.c.bf16 %v1116, %v1113
        %v1122 = vunpack.c.l.b16 %v905
        %v1123 = vpack.c.b16 %v1122, %v1122
        %1124 = vrot.lane.b32.xlu0 %v1123, 96
        %v1125 = vpop.permute.xlu0 %1124
        %v1127 = vsel %vm849, %v1125, 0
        %1129 = vmatprep.subr.bf16.mxu0 0
        %1130 = vmatpush1.bf16.msra.mxu0 %v1119
        %1131 = vmatprep.subr.bf16.mxu0 0
        %1132 = vmatpush1.bf16.msra.mxu0 %v1120
        %1133 = vmatprep.subr.bf16.mxu0 0
        %1134 = vmatpush1.bf16.msra.mxu0 0
        %1135 = vmatprep.subr.bf16.mxu0 0
        %1136 = vmatpush1.bf16.msra.mxu0 0
        %1137 = vmatprep.subr.bf16.mxu0 0
        %1138 = vmatpush1.bf16.msra.mxu0 0
        %1139 = vmatprep.subr.bf16.mxu0 0
        %1140 = vmatpush1.bf16.msra.mxu0 0
        %1141 = vmatprep.subr.bf16.mxu0 0
        %1142 = vmatpush1.bf16.msra.mxu0 0
        %1143 = vmatprep.subr.bf16.mxu0 0
        %1144 = vmatpush1.bf16.msra.mxu0 0
        %1145 = vmatprep.subr.bf16.mxu0 0
        %1146 = vmatpush1.bf16.msra.mxu0 0
        %1147 = vmatprep.subr.bf16.mxu0 0
        %1148 = vmatpush1.bf16.msra.mxu0 0
        %1149 = vmatprep.subr.bf16.mxu0 0
        %1150 = vmatpush1.bf16.msra.mxu0 0
        %1151 = vmatprep.subr.bf16.mxu0 0
        %1152 = vmatpush1.bf16.msra.mxu0 0
        %1153 = vmatprep.subr.bf16.mxu0 0
        %1154 = vmatpush1.bf16.msra.mxu0 0
        %1155 = vmatprep.subr.bf16.mxu0 0
        %1156 = vmatpush1.bf16.msra.mxu0 0
        %1157 = vmatprep.subr.bf16.mxu0 0
        %1158 = vmatpush1.bf16.msra.mxu0 0
        %1159 = vmatprep.subr.bf16.mxu0 0
        %1160 = vmatpush1.bf16.msra.mxu0 0
        %1161 = vmatprep.mubr.bf16.mxu0 0
        %1162 = vmatmul.mubr.bf16.gmra.mrb[0].mxu0 %v1127
        %v1163 = vpop.f32.mrb[0].mxu0
        %v1164 = vadd.f32 0.0, %v1163
        %v1165 = vpop.f32.mrb[0].mxu0
        %v1166 = vpop.f32.mrb[0].mxu0
        %v1167 = vpop.f32.mrb[0].mxu0
        %1168 = vdwg.mxu0
        %v1170 = vsel %vm849, %v905, 0
        %1172 = vmatprep.subr.bf16.mxu0 0
        %1173 = vmatpush1.bf16.msra.mxu0 %v906
        %1174 = vmatprep.subr.bf16.mxu0 0
        %1175 = vmatpush1.bf16.msra.mxu0 %v907
        %1176 = vmatprep.subr.bf16.mxu0 0
        %1177 = vmatpush1.bf16.msra.mxu0 0
        %1178 = vmatprep.subr.bf16.mxu0 0
        %1179 = vmatpush1.bf16.msra.mxu0 0
        %1180 = vmatprep.subr.bf16.mxu0 0
        %1181 = vmatpush1.bf16.msra.mxu0 0
        %1182 = vmatprep.subr.bf16.mxu0 0
        %1183 = vmatpush1.bf16.msra.mxu0 0
        %1184 = vmatprep.subr.bf16.mxu0 0
        %1185 = vmatpush1.bf16.msra.mxu0 0
        %1186 = vmatprep.subr.bf16.mxu0 0
        %1187 = vmatpush1.bf16.msra.mxu0 0
        %1188 = vmatprep.subr.bf16.mxu0 0
        %1189 = vmatpush1.bf16.msra.mxu0 0
        %1190 = vmatprep.subr.bf16.mxu0 0
        %1191 = vmatpush1.bf16.msra.mxu0 0
        %1192 = vmatprep.subr.bf16.mxu0 0
        %1193 = vmatpush1.bf16.msra.mxu0 0
        %1194 = vmatprep.subr.bf16.mxu0 0
        %1195 = vmatpush1.bf16.msra.mxu0 0
        %1196 = vmatprep.subr.bf16.mxu0 0
        %1197 = vmatpush1.bf16.msra.mxu0 0
        %1198 = vmatprep.subr.bf16.mxu0 0
        %1199 = vmatpush1.bf16.msra.mxu0 0
        %1200 = vmatprep.subr.bf16.mxu0 0
        %1201 = vmatpush1.bf16.msra.mxu0 0
        %1202 = vmatprep.subr.bf16.mxu0 0
        %1203 = vmatpush1.bf16.msra.mxu0 0
        %1204 = vmatprep.mubr.bf16.mxu0 0
        %1205 = vmatmul.mubr.bf16.gmra.mrb[0].mxu0 %v1170
        %v1206 = vpop.f32.mrb[0].mxu0
        %v1207 = vadd.f32 %v1164, %v1206
        %v1208 = vpop.f32.mrb[0].mxu0
        %v1209 = vpop.f32.mrb[0].mxu0
        %v1210 = vpop.f32.mrb[0].mxu0
        %1211 = vdwg.mxu0
        %v1212 = vsel %vm692, %v534, -inf
        %v1213 = vsel %vm692, %v537, -inf
        %v1214 = vsel %vm692, %v542, -inf
        %v1215 = vsel %vm692, %v545, -inf
        %v1216 = vmax.f32 %v1212, %v1213
        %v1217 = vmax.f32 %v1214, %v1215
        %v1218 = vmax.f32 %v1216, %v1217
        %v1219 = vrot.slane %v1218, 4
        %v1220 = vmax.f32 %v1218, %v1219
        %v1221 = vrot.slane %v1220, 2
        %v1222 = vmax.f32 %v1220, %v1221
        %v1223 = vrot.slane %v1222, 1
        %v1224 = vmax.f32 %v1222, %v1223
        %v1225 = vsub.f32 %v534, %v1224
        %v1226 = vsub.f32 %v537, %v1224
        %v1227 = vsub.f32 %v542, %v1224
        %v1228 = vsub.f32 %v545, %v1224
        %v1229 = vmul.f32 %v1225, 1.442695
        %v1230 = vpow.pop %v1229
        %v1231 = vmul.f32 %v1226, 1.442695
        %v1232 = vpow.pop %v1231
        %v1233 = vmul.f32 %v1227, 1.442695
        %v1234 = vpow.pop %v1233
        %v1235 = vmul.f32 %v1228, 1.442695
        %v1236 = vpow.pop %v1235
        %v1237 = vsel %vm692, %v1230, 0.0
        %v1238 = vsel %vm692, %v1232, 0.0
        %v1239 = vadd.f32 %v1237, %v1238
        %v1240 = vsel %vm692, %v1234, 0.0
        %v1241 = vadd.f32 %v1239, %v1240
        %v1242 = vsel %vm692, %v1236, 0.0
        %v1243 = vadd.f32 %v1241, %v1242
        %v1244 = vrot.slane %v1243, 4
        %v1245 = vadd.f32 %v1243, %v1244
        %v1246 = vrot.slane %v1245, 2
        %v1247 = vadd.f32 %v1245, %v1246
        %v1248 = vrot.slane %v1247, 1
        %v1249 = vadd.f32 %v1247, %v1248
        %v1250 = vrcp.pop %v1249
        %v1251 = vmul.f32 %v1230, %v1250
        %v1252 = vmul.f32 %v1232, %v1250
        %v1253 = vmul.f32 %v1234, %v1250
        %v1254 = vmul.f32 %v1236, %v1250
        %v1255 = vpack.c.bf16 %v1252, %v1251
        %v1256 = vpack.c.bf16 %v1254, %v1253
        %v1257 = vsel %vm692, %v598, -inf
        %1258 = vmax.xlane.f32.xlu0 %v1257
        %v1259 = vpop.xlane.xlu0 %1258
        %v1260 = vsel %vm692, %v601, -inf
        %1261 = vmax.xlane.f32.xlu0 %v1260
        %v1262 = vpop.xlane.xlu0 %1261
        %v1263 = vsel %vm692, %v606, -inf
        %1264 = vmax.xlane.f32.xlu0 %v1263
        %v1265 = vpop.xlane.xlu0 %1264
        %v1266 = vsel %vm692, %v609, -inf
        %1267 = vmax.xlane.f32.xlu0 %v1266
        %v1268 = vpop.xlane.xlu0 %1267
        %v1269 = vsub.f32 %v598, %v1259
        %v1270 = vsub.f32 %v601, %v1262
        %v1271 = vsub.f32 %v606, %v1265
        %v1272 = vsub.f32 %v609, %v1268
        %v1273 = vmul.f32 %v1269, 1.442695
        %v1274 = vpow.pop %v1273
        %v1275 = vmul.f32 %v1270, 1.442695
        %v1276 = vpow.pop %v1275
        %v1277 = vmul.f32 %v1271, 1.442695
        %v1278 = vpow.pop %v1277
        %v1279 = vmul.f32 %v1272, 1.442695
        %v1280 = vpow.pop %v1279
        %v1281 = vsel %vm692, %v1274, 0.0
        %1282 = vadd.xlane.f32.xlu0 %v1281
        %v1283 = vpop.xlane.xlu0 %1282
        %v1284 = vsel %vm692, %v1276, 0.0
        %1285 = vadd.xlane.f32.xlu0 %v1284
        %v1286 = vpop.xlane.xlu0 %1285
        %v1287 = vsel %vm692, %v1278, 0.0
        %1288 = vadd.xlane.f32.xlu0 %v1287
        %v1289 = vpop.xlane.xlu0 %1288
        %v1290 = vsel %vm692, %v1280, 0.0
        %1291 = vadd.xlane.f32.xlu0 %v1290
        %v1292 = vpop.xlane.xlu0 %1291
        %v1293 = vrcp.pop %v1283
        %v1294 = vrcp.pop %v1286
        %v1295 = vrcp.pop %v1289
        %v1296 = vrcp.pop %v1292
        %v1297 = vmul.f32 %v1274, %v1293
        %v1298 = vmul.f32 %v1276, %v1294
        %v1299 = vmul.f32 %v1278, %v1295
        %v1300 = vmul.f32 %v1280, %v1296
        %v1301 = vpack.c.bf16 %v1298, %v1297
        %v1302 = vpack.c.bf16 %v1300, %v1299
        %v1303 = vpack.c.bf16 %v665, %v662
        %v1304 = vpack.c.bf16 %v673, %v670
        %v1306 = vsel %vm692, %v1303, 0
        %v1309 = vsel %vm692, %v1304, 0
        %v1312 = vsel %vm692, %v1301, 0
        %v1315 = vsel %vm692, %v1302, 0
        %1317 = vmatprep.subr.bf16.mxu0 0
        %1318 = vmatpush1.bf16.xpose.msra.mxu0 %v1312
        %1319 = vmatprep.subr.bf16.mxu0 0
        %1320 = vmatpush1.bf16.xpose.msra.mxu0 %v1315
        %1321 = vmatprep.subr.bf16.mxu0 0
        %1322 = vmatpush1.bf16.xpose.msra.mxu0 0
        %1323 = vmatprep.subr.bf16.mxu0 0
        %1324 = vmatpush1.bf16.xpose.msra.mxu0 0
        %1325 = vmatprep.subr.bf16.mxu0 0
        %1326 = vmatpush1.bf16.xpose.msra.mxu0 0
        %1327 = vmatprep.subr.bf16.mxu0 0
        %1328 = vmatpush1.bf16.xpose.msra.mxu0 0
        %1329 = vmatprep.subr.bf16.mxu0 0
        %1330 = vmatpush1.bf16.xpose.msra.mxu0 0
        %1331 = vmatprep.subr.bf16.mxu0 0
        %1332 = vmatpush1.bf16.xpose.msra.mxu0 0
        %1333 = vmatprep.subr.bf16.mxu0 0
        %1334 = vmatpush1.bf16.xpose.msra.mxu0 0
        %1335 = vmatprep.subr.bf16.mxu0 0
        %1336 = vmatpush1.bf16.xpose.msra.mxu0 0
        %1337 = vmatprep.subr.bf16.mxu0 0
        %1338 = vmatpush1.bf16.xpose.msra.mxu0 0
        %1339 = vmatprep.subr.bf16.mxu0 0
        %1340 = vmatpush1.bf16.xpose.msra.mxu0 0
        %1341 = vmatprep.subr.bf16.mxu0 0
        %1342 = vmatpush1.bf16.xpose.msra.mxu0 0
        %1343 = vmatprep.subr.bf16.mxu0 0
        %1344 = vmatpush1.bf16.xpose.msra.mxu0 0
        %1345 = vmatprep.subr.bf16.mxu0 0
        %1346 = vmatpush1.bf16.xpose.msra.mxu0 0
        %1347 = vmatprep.subr.bf16.mxu0 0
        %1348 = vmatpush1.bf16.xpose.msra.mxu0 0
        %1349 = vmatprep.mubr.bf16.mxu0 0
        %1350 = vmatmul.mubr.bf16.gmra.mrb[0].mxu0 %v1306
        %v1351 = vpop.f32.mrb[0].mxu0
        %v1352 = vadd.f32 0.0, %v1351
        %v1353 = vpop.f32.mrb[0].mxu0
        %v1354 = vpop.f32.mrb[0].mxu0
        %v1355 = vadd.f32 0.0, %v1354
        %v1356 = vpop.f32.mrb[0].mxu0
        %1357 = vmatprep.mubr.bf16.mxu0 0
        %1358 = vmatmul.mubr.bf16.gmra.mrb[0].mxu0 %v1309
        %v1359 = vpop.f32.mrb[0].mxu0
        %v1360 = vadd.f32 0.0, %v1359
        %v1361 = vpop.f32.mrb[0].mxu0
        %v1362 = vpop.f32.mrb[0].mxu0
        %v1363 = vadd.f32 0.0, %v1362
        %v1364 = vpop.f32.mrb[0].mxu0
        %1365 = vdwg.mxu0
        %v1366 = vpack.c.bf16 %v1355, %v1352
        %v1367 = vpack.c.bf16 %v1363, %v1360
        %v1369 = vsel %vm849, %v1366, 0
        %v1372 = vsel %vm849, %v1367, 0
        %1374 = vmatprep.subr.bf16.mxu0 0
        %1375 = vmatpush1.bf16.msra.mxu0 %v1255
        %1376 = vmatprep.subr.bf16.mxu0 0
        %1377 = vmatpush1.bf16.msra.mxu0 %v1256
        %1378 = vmatprep.subr.bf16.mxu0 0
        %1379 = vmatpush1.bf16.msra.mxu0 0
        %1380 = vmatprep.subr.bf16.mxu0 0
        %1381 = vmatpush1.bf16.msra.mxu0 0
        %1382 = vmatprep.subr.bf16.mxu0 0
        %1383 = vmatpush1.bf16.msra.mxu0 0
        %1384 = vmatprep.subr.bf16.mxu0 0
        %1385 = vmatpush1.bf16.msra.mxu0 0
        %1386 = vmatprep.subr.bf16.mxu0 0
        %1387 = vmatpush1.bf16.msra.mxu0 0
        %1388 = vmatprep.subr.bf16.mxu0 0
        %1389 = vmatpush1.bf16.msra.mxu0 0
        %1390 = vmatprep.subr.bf16.mxu0 0
        %1391 = vmatpush1.bf16.msra.mxu0 0
        %1392 = vmatprep.subr.bf16.mxu0 0
        %1393 = vmatpush1.bf16.msra.mxu0 0
        %1394 = vmatprep.subr.bf16.mxu0 0
        %1395 = vmatpush1.bf16.msra.mxu0 0
        %1396 = vmatprep.subr.bf16.mxu0 0
        %1397 = vmatpush1.bf16.msra.mxu0 0
        %1398 = vmatprep.subr.bf16.mxu0 0
        %1399 = vmatpush1.bf16.msra.mxu0 0
        %1400 = vmatprep.subr.bf16.mxu0 0
        %1401 = vmatpush1.bf16.msra.mxu0 0
        %1402 = vmatprep.subr.bf16.mxu0 0
        %1403 = vmatpush1.bf16.msra.mxu0 0
        %1404 = vmatprep.subr.bf16.mxu0 0
        %1405 = vmatpush1.bf16.msra.mxu0 0
        %1406 = vmatprep.mubr.bf16.mxu0 0
        %1407 = vmatmul.mubr.bf16.gmra.mrb[0].mxu0 %v1369
        %v1408 = vpop.f32.mrb[0].mxu0
        %v1409 = vadd.f32 0.0, %v1408
        %v1410 = vpop.f32.mrb[0].mxu0
        %v1411 = vpop.f32.mrb[0].mxu0
        %v1412 = vadd.f32 0.0, %v1411
        %v1413 = vpop.f32.mrb[0].mxu0
        %1414 = vmatprep.mubr.bf16.mxu0 0
        %1415 = vmatmul.mubr.bf16.gmra.mrb[0].mxu0 %v1372
        %v1416 = vpop.f32.mrb[0].mxu0
        %v1417 = vadd.f32 0.0, %v1416
        %v1418 = vpop.f32.mrb[0].mxu0
        %v1419 = vpop.f32.mrb[0].mxu0
        %v1420 = vadd.f32 0.0, %v1419
        %v1421 = vpop.f32.mrb[0].mxu0
        %1422 = vdwg.mxu0
        %v1423 = vpack.c.bf16 %v1412, %v1409
        %v1424 = vpack.c.bf16 %v1420, %v1417
        %1425 = vrot.lane.b32.xlu0 %v1123, 64
        %v1426 = vpop.permute.xlu0 %1425
        %v1428 = vsel %vm849, %v1426, 0
        %1430 = vmatprep.subr.bf16.mxu0 0
        %1431 = vmatpush1.bf16.msra.mxu0 %v1423
        %1432 = vmatprep.subr.bf16.mxu0 0
        %1433 = vmatpush1.bf16.msra.mxu0 %v1424
        %1434 = vmatprep.subr.bf16.mxu0 0
        %1435 = vmatpush1.bf16.msra.mxu0 0
        %1436 = vmatprep.subr.bf16.mxu0 0
        %1437 = vmatpush1.bf16.msra.mxu0 0
        %1438 = vmatprep.subr.bf16.mxu0 0
        %1439 = vmatpush1.bf16.msra.mxu0 0
        %1440 = vmatprep.subr.bf16.mxu0 0
        %1441 = vmatpush1.bf16.msra.mxu0 0
        %1442 = vmatprep.subr.bf16.mxu0 0
        %1443 = vmatpush1.bf16.msra.mxu0 0
        %1444 = vmatprep.subr.bf16.mxu0 0
        %1445 = vmatpush1.bf16.msra.mxu0 0
        %1446 = vmatprep.subr.bf16.mxu0 0
        %1447 = vmatpush1.bf16.msra.mxu0 0
        %1448 = vmatprep.subr.bf16.mxu0 0
        %1449 = vmatpush1.bf16.msra.mxu0 0
        %1450 = vmatprep.subr.bf16.mxu0 0
        %1451 = vmatpush1.bf16.msra.mxu0 0
        %1452 = vmatprep.subr.bf16.mxu0 0
        %1453 = vmatpush1.bf16.msra.mxu0 0
        %1454 = vmatprep.subr.bf16.mxu0 0
        %1455 = vmatpush1.bf16.msra.mxu0 0
        %1456 = vmatprep.subr.bf16.mxu0 0
        %1457 = vmatpush1.bf16.msra.mxu0 0
        %1458 = vmatprep.subr.bf16.mxu0 0
        %1459 = vmatpush1.bf16.msra.mxu0 0
        %1460 = vmatprep.subr.bf16.mxu0 0
        %1461 = vmatpush1.bf16.msra.mxu0 0
        %1462 = vmatprep.mubr.bf16.mxu0 0
        %1463 = vmatmul.mubr.bf16.gmra.mrb[0].mxu0 %v1428
        %v1464 = vpop.f32.mrb[0].mxu0
        %v1465 = vadd.f32 0.0, %v1464
        %v1466 = vpop.f32.mrb[0].mxu0
        %v1467 = vpop.f32.mrb[0].mxu0
        %v1468 = vpop.f32.mrb[0].mxu0
        %1469 = vdwg.mxu0
        %v1470 = vadd.f32 %v1207, %v1465
        %v1471 = vsel %vm692, %v550, -inf
        %v1472 = vsel %vm692, %v553, -inf
        %v1473 = vsel %vm692, %v558, -inf
        %v1474 = vsel %vm692, %v561, -inf
        %v1475 = vmax.f32 %v1471, %v1472
        %v1476 = vmax.f32 %v1473, %v1474
        %v1477 = vmax.f32 %v1475, %v1476
        %v1478 = vrot.slane %v1477, 4
        %v1479 = vmax.f32 %v1477, %v1478
        %v1480 = vrot.slane %v1479, 2
        %v1481 = vmax.f32 %v1479, %v1480
        %v1482 = vrot.slane %v1481, 1
        %v1483 = vmax.f32 %v1481, %v1482
        %v1484 = vsub.f32 %v550, %v1483
        %v1485 = vsub.f32 %v553, %v1483
        %v1486 = vsub.f32 %v558, %v1483
        %v1487 = vsub.f32 %v561, %v1483
        %v1488 = vmul.f32 %v1484, 1.442695
        %v1489 = vpow.pop %v1488
        %v1490 = vmul.f32 %v1485, 1.442695
        %v1491 = vpow.pop %v1490
        %v1492 = vmul.f32 %v1486, 1.442695
        %v1493 = vpow.pop %v1492
        %v1494 = vmul.f32 %v1487, 1.442695
        %v1495 = vpow.pop %v1494
        %v1496 = vsel %vm692, %v1489, 0.0
        %v1497 = vsel %vm692, %v1491, 0.0
        %v1498 = vadd.f32 %v1496, %v1497
        %v1499 = vsel %vm692, %v1493, 0.0
        %v1500 = vadd.f32 %v1498, %v1499
        %v1501 = vsel %vm692, %v1495, 0.0
        %v1502 = vadd.f32 %v1500, %v1501
        %v1503 = vrot.slane %v1502, 4
        %v1504 = vadd.f32 %v1502, %v1503
        %v1505 = vrot.slane %v1504, 2
        %v1506 = vadd.f32 %v1504, %v1505
        %v1507 = vrot.slane %v1506, 1
        %v1508 = vadd.f32 %v1506, %v1507
        %v1509 = vrcp.pop %v1508
        %v1510 = vmul.f32 %v1489, %v1509
        %v1511 = vmul.f32 %v1491, %v1509
        %v1512 = vmul.f32 %v1493, %v1509
        %v1513 = vmul.f32 %v1495, %v1509
        %v1514 = vpack.c.bf16 %v1511, %v1510
        %v1515 = vpack.c.bf16 %v1513, %v1512
        %v1516 = vsel %vm692, %v614, -inf
        %1517 = vmax.xlane.f32.xlu0 %v1516
        %v1518 = vpop.xlane.xlu0 %1517
        %v1519 = vsel %vm692, %v617, -inf
        %1520 = vmax.xlane.f32.xlu0 %v1519
        %v1521 = vpop.xlane.xlu0 %1520
        %v1522 = vsel %vm692, %v622, -inf
        %1523 = vmax.xlane.f32.xlu0 %v1522
        %v1524 = vpop.xlane.xlu0 %1523
        %v1525 = vsel %vm692, %v625, -inf
        %1526 = vmax.xlane.f32.xlu0 %v1525
        %v1527 = vpop.xlane.xlu0 %1526
        %v1528 = vsub.f32 %v614, %v1518
        %v1529 = vsub.f32 %v617, %v1521
        %v1530 = vsub.f32 %v622, %v1524
        %v1531 = vsub.f32 %v625, %v1527
        %v1532 = vmul.f32 %v1528, 1.442695
        %v1533 = vpow.pop %v1532
        %v1534 = vmul.f32 %v1529, 1.442695
        %v1535 = vpow.pop %v1534
        %v1536 = vmul.f32 %v1530, 1.442695
        %v1537 = vpow.pop %v1536
        %v1538 = vmul.f32 %v1531, 1.442695
        %v1539 = vpow.pop %v1538
        %v1540 = vsel %vm692, %v1533, 0.0
        %1541 = vadd.xlane.f32.xlu0 %v1540
        %v1542 = vpop.xlane.xlu0 %1541
        %v1543 = vsel %vm692, %v1535, 0.0
        %1544 = vadd.xlane.f32.xlu0 %v1543
        %v1545 = vpop.xlane.xlu0 %1544
        %v1546 = vsel %vm692, %v1537, 0.0
        %1547 = vadd.xlane.f32.xlu0 %v1546
        %v1548 = vpop.xlane.xlu0 %1547
        %v1549 = vsel %vm692, %v1539, 0.0
        %1550 = vadd.xlane.f32.xlu0 %v1549
        %v1551 = vpop.xlane.xlu0 %1550
        %v1552 = vrcp.pop %v1542
        %v1553 = vrcp.pop %v1545
        %v1554 = vrcp.pop %v1548
        %v1555 = vrcp.pop %v1551
        %v1556 = vmul.f32 %v1533, %v1552
        %v1557 = vmul.f32 %v1535, %v1553
        %v1558 = vmul.f32 %v1537, %v1554
        %v1559 = vmul.f32 %v1539, %v1555
        %v1560 = vpack.c.bf16 %v1557, %v1556
        %v1561 = vpack.c.bf16 %v1559, %v1558
        %v1562 = vpack.c.bf16 %v681, %v678
        %v1563 = vpack.c.bf16 %v689, %v686
        %v1565 = vsel %vm692, %v1562, 0
        %v1568 = vsel %vm692, %v1563, 0
        %v1571 = vsel %vm692, %v1560, 0
        %v1574 = vsel %vm692, %v1561, 0
        %1576 = vmatprep.subr.bf16.mxu0 0
        %1577 = vmatpush1.bf16.xpose.msra.mxu0 %v1571
        %1578 = vmatprep.subr.bf16.mxu0 0
        %1579 = vmatpush1.bf16.xpose.msra.mxu0 %v1574
        %1580 = vmatprep.subr.bf16.mxu0 0
        %1581 = vmatpush1.bf16.xpose.msra.mxu0 0
        %1582 = vmatprep.subr.bf16.mxu0 0
        %1583 = vmatpush1.bf16.xpose.msra.mxu0 0
        %1584 = vmatprep.subr.bf16.mxu0 0
        %1585 = vmatpush1.bf16.xpose.msra.mxu0 0
        %1586 = vmatprep.subr.bf16.mxu0 0
        %1587 = vmatpush1.bf16.xpose.msra.mxu0 0
        %1588 = vmatprep.subr.bf16.mxu0 0
        %1589 = vmatpush1.bf16.xpose.msra.mxu0 0
        %1590 = vmatprep.subr.bf16.mxu0 0
        %1591 = vmatpush1.bf16.xpose.msra.mxu0 0
        %1592 = vmatprep.subr.bf16.mxu0 0
        %1593 = vmatpush1.bf16.xpose.msra.mxu0 0
        %1594 = vmatprep.subr.bf16.mxu0 0
        %1595 = vmatpush1.bf16.xpose.msra.mxu0 0
        %1596 = vmatprep.subr.bf16.mxu0 0
        %1597 = vmatpush1.bf16.xpose.msra.mxu0 0
        %1598 = vmatprep.subr.bf16.mxu0 0
        %1599 = vmatpush1.bf16.xpose.msra.mxu0 0
        %1600 = vmatprep.subr.bf16.mxu0 0
        %1601 = vmatpush1.bf16.xpose.msra.mxu0 0
        %1602 = vmatprep.subr.bf16.mxu0 0
        %1603 = vmatpush1.bf16.xpose.msra.mxu0 0
        %1604 = vmatprep.subr.bf16.mxu0 0
        %1605 = vmatpush1.bf16.xpose.msra.mxu0 0
        %1606 = vmatprep.subr.bf16.mxu0 0
        %1607 = vmatpush1.bf16.xpose.msra.mxu0 0
        %1608 = vmatprep.mubr.bf16.mxu0 0
        %1609 = vmatmul.mubr.bf16.gmra.mrb[0].mxu0 %v1565
        %v1610 = vpop.f32.mrb[0].mxu0
        %v1611 = vadd.f32 0.0, %v1610
        %v1612 = vpop.f32.mrb[0].mxu0
        %v1613 = vpop.f32.mrb[0].mxu0
        %v1614 = vadd.f32 0.0, %v1613
        %v1615 = vpop.f32.mrb[0].mxu0
        %1616 = vmatprep.mubr.bf16.mxu0 0
        %1617 = vmatmul.mubr.bf16.gmra.mrb[0].mxu0 %v1568
        %v1618 = vpop.f32.mrb[0].mxu0
        %v1619 = vadd.f32 0.0, %v1618
        %v1620 = vpop.f32.mrb[0].mxu0
        %v1621 = vpop.f32.mrb[0].mxu0
        %v1622 = vadd.f32 0.0, %v1621
        %v1623 = vpop.f32.mrb[0].mxu0
        %1624 = vdwg.mxu0
        %v1625 = vpack.c.bf16 %v1614, %v1611
        %v1626 = vpack.c.bf16 %v1622, %v1619
        %v1628 = vsel %vm849, %v1625, 0
        %v1631 = vsel %vm849, %v1626, 0
        %1633 = vmatprep.subr.bf16.mxu0 0
        %1634 = vmatpush1.bf16.msra.mxu0 %v1514
        %1635 = vmatprep.subr.bf16.mxu0 0
        %1636 = vmatpush1.bf16.msra.mxu0 %v1515
        %1637 = vmatprep.subr.bf16.mxu0 0
        %1638 = vmatpush1.bf16.msra.mxu0 0
        %1639 = vmatprep.subr.bf16.mxu0 0
        %1640 = vmatpush1.bf16.msra.mxu0 0
        %1641 = vmatprep.subr.bf16.mxu0 0
        %1642 = vmatpush1.bf16.msra.mxu0 0
        %1643 = vmatprep.subr.bf16.mxu0 0
        %1644 = vmatpush1.bf16.msra.mxu0 0
        %1645 = vmatprep.subr.bf16.mxu0 0
        %1646 = vmatpush1.bf16.msra.mxu0 0
        %1647 = vmatprep.subr.bf16.mxu0 0
        %1648 = vmatpush1.bf16.msra.mxu0 0
        %1649 = vmatprep.subr.bf16.mxu0 0
        %1650 = vmatpush1.bf16.msra.mxu0 0
        %1651 = vmatprep.subr.bf16.mxu0 0
        %1652 = vmatpush1.bf16.msra.mxu0 0
        %1653 = vmatprep.subr.bf16.mxu0 0
        %1654 = vmatpush1.bf16.msra.mxu0 0
        %1655 = vmatprep.subr.bf16.mxu0 0
        %1656 = vmatpush1.bf16.msra.mxu0 0
        %1657 = vmatprep.subr.bf16.mxu0 0
        %1658 = vmatpush1.bf16.msra.mxu0 0
        %1659 = vmatprep.subr.bf16.mxu0 0
        %1660 = vmatpush1.bf16.msra.mxu0 0
        %1661 = vmatprep.subr.bf16.mxu0 0
        %1662 = vmatpush1.bf16.msra.mxu0 0
        %1663 = vmatprep.subr.bf16.mxu0 0
        %1664 = vmatpush1.bf16.msra.mxu0 0
        %1665 = vmatprep.mubr.bf16.mxu0 0
        %1666 = vmatmul.mubr.bf16.gmra.mrb[0].mxu0 %v1628
        %v1667 = vpop.f32.mrb[0].mxu0
        %v1668 = vadd.f32 0.0, %v1667
        %v1669 = vpop.f32.mrb[0].mxu0
        %v1670 = vpop.f32.mrb[0].mxu0
        %v1671 = vadd.f32 0.0, %v1670
        %v1672 = vpop.f32.mrb[0].mxu0
        %1673 = vmatprep.mubr.bf16.mxu0 0
        %1674 = vmatmul.mubr.bf16.gmra.mrb[0].mxu0 %v1631
        %v1675 = vpop.f32.mrb[0].mxu0
        %v1676 = vadd.f32 0.0, %v1675
        %v1677 = vpop.f32.mrb[0].mxu0
        %v1678 = vpop.f32.mrb[0].mxu0
        %v1679 = vadd.f32 0.0, %v1678
        %v1680 = vpop.f32.mrb[0].mxu0
        %1681 = vdwg.mxu0
        %v1682 = vpack.c.bf16 %v1671, %v1668
        %v1683 = vpack.c.bf16 %v1679, %v1676
        %1684 = vrot.lane.b32.xlu0 %v1123, 32
        %v1685 = vpop.permute.xlu0 %1684
        %v1687 = vsel %vm849, %v1685, 0
        %1689 = vmatprep.subr.bf16.mxu0 0
        %1690 = vmatpush1.bf16.msra.mxu0 %v1682
        %1691 = vmatprep.subr.bf16.mxu0 0
        %1692 = vmatpush1.bf16.msra.mxu0 %v1683
        %1693 = vmatprep.subr.bf16.mxu0 0
        %1694 = vmatpush1.bf16.msra.mxu0 0
        %1695 = vmatprep.subr.bf16.mxu0 0
        %1696 = vmatpush1.bf16.msra.mxu0 0
        %1697 = vmatprep.subr.bf16.mxu0 0
        %1698 = vmatpush1.bf16.msra.mxu0 0
        %1699 = vmatprep.subr.bf16.mxu0 0
        %1700 = vmatpush1.bf16.msra.mxu0 0
        %1701 = vmatprep.subr.bf16.mxu0 0
        %1702 = vmatpush1.bf16.msra.mxu0 0
        %1703 = vmatprep.subr.bf16.mxu0 0
        %1704 = vmatpush1.bf16.msra.mxu0 0
        %1705 = vmatprep.subr.bf16.mxu0 0
        %1706 = vmatpush1.bf16.msra.mxu0 0
        %1707 = vmatprep.subr.bf16.mxu0 0
        %1708 = vmatpush1.bf16.msra.mxu0 0
        %1709 = vmatprep.subr.bf16.mxu0 0
        %1710 = vmatpush1.bf16.msra.mxu0 0
        %1711 = vmatprep.subr.bf16.mxu0 0
        %1712 = vmatpush1.bf16.msra.mxu0 0
        %1713 = vmatprep.subr.bf16.mxu0 0
        %1714 = vmatpush1.bf16.msra.mxu0 0
        %1715 = vmatprep.subr.bf16.mxu0 0
        %1716 = vmatpush1.bf16.msra.mxu0 0
        %1717 = vmatprep.subr.bf16.mxu0 0
        %1718 = vmatpush1.bf16.msra.mxu0 0
        %1719 = vmatprep.subr.bf16.mxu0 0
        %1720 = vmatpush1.bf16.msra.mxu0 0
        %1721 = vmatprep.mubr.bf16.mxu0 0
        %1722 = vmatmul.mubr.bf16.gmra.mrb[0].mxu0 %v1687
        %v1723 = vpop.f32.mrb[0].mxu0
        %v1724 = vadd.f32 0.0, %v1723
        %v1725 = vpop.f32.mrb[0].mxu0
        %v1726 = vpop.f32.mrb[0].mxu0
        %v1727 = vpop.f32.mrb[0].mxu0
        %1728 = vdwg.mxu0
        %v1729 = vadd.f32 %v1470, %v1724
        %v1730 = vld [vmem:[%s3] sm:$0xff]
        %1732 = vset.pattern.permute.xlu0 0
        %1733 = vperm.xlu0 %1732, %v1730
        %v1734 = vpop.permute.xlu0 %1733
        %v1736 = vadd.f32 %v1729, %v1734
        %v1737 = vsel %vm692, %v1736, 0.0
        %v1738 = vrot.slane %v1737, 4
        %v1739 = vadd.f32 %v1737, %v1738
        %v1740 = vrot.slane %v1739, 2
        %v1741 = vadd.f32 %v1739, %v1740
        %v1742 = vrot.slane %v1741, 1
        %v1743 = vadd.f32 %v1741, %v1742
        %v1744 = vmul.f32 %v1743, 0.125
        %v1745 = vmul.f32 %v1736, %v1736
        %v1746 = vsel %vm692, %v1745, 0.0
        %v1747 = vrot.slane %v1746, 4
        %v1748 = vadd.f32 %v1746, %v1747
        %v1749 = vrot.slane %v1748, 2
        %v1750 = vadd.f32 %v1748, %v1749
        %v1751 = vrot.slane %v1750, 1
        %v1752 = vadd.f32 %v1750, %v1751
        %v1753 = vmul.f32 %v1752, 0.125
        %v1754 = vmul.f32 %v1744, %v1744
        %v1755 = vsub.f32 %v1753, %v1754
        %v1756 = vsub.f32 %v1736, %v1744
        %v1757 = vadd.f32 %v1755, 1e-05
        %v1758 = vrsqrt.pop %v1757
        %v1759 = vld [vmem:[%s4] sm:$0xff]
        %1761 = vset.pattern.permute.xlu0 0
        %1762 = vperm.xlu0 %1761, %v1759
        %v1763 = vpop.permute.xlu0 %1762
        %v1765 = vmul.f32 %v1758, %v1763
        %v1766 = vmul.f32 %v1756, %v1765
        %1767 = vst.msk [vmem:[%s215] sm:$0xff] %vm692, %v1766
        %s1768 = sand.u32 %s137, 1
        %s1769 = scalar_lea.sflag [#allocation3], %s1768
        %s1770 = sand.u32 %s137, 1
        %s1771 = smul.addr %s1770, 8
        %s1772 = scalar_lea.vmem [#allocation2], %s1771
        // Predicated region
        $region41: #{tpu_custom_call.1} parent=39 // pred_check
          %p1773 = pneg %p147
        $region42: #{tpu_custom_call.1} parent=39 // pred_check_branch
          %1775 = sbr.rel (%p1773) target = $region44
        $region43: #{tpu_custom_call.1} parent=39 // pred_region
          %s1777 = ssub.s32 128, 128
          %1778 = vsyncadd %s1769, %s1777
          %s1779 = smul.addr %s19, 128
          %s1780 = scalar_lea.hbm %s5, %s1779
          %s1782 = sshll.u32 %s1772, 4
          %s1783 = int_to_ptr.vmem [resolvable:$true] %s1782
          %1785 = dma.vmem_to_hbm [thread:$0]  %s1783, 128, %s1780, %s1769
        $region44: #{tpu_custom_call.1} parent=39 // pred_fallthru
          _
      $region40: #{tpu_custom_call.1} parent=5 // pred_fallthru
        _
      %p1786 = scmp.le.s32.totalorder 2, %s14
      // Predicated region
      $region45: #{tpu_custom_call.1} parent=5 // pred_check
        %p1787 = pneg %p1786
      $region46: #{tpu_custom_call.1} parent=5 // pred_check_branch
        %1789 = sbr.rel (%p1787) target = $region48
      $region47: #{tpu_custom_call.1} parent=5 // pred_region
        %s1790 = ssub.s32 %s14, 2
        // Predicated region
        $region49: #{tpu_custom_call.1} parent=47 // pred_check
          %p1791 = pneg %p153
        $region50: #{tpu_custom_call.1} parent=47 // pred_check_branch
          %1793 = sbr.rel (%p1791) target = $region52
        $region51: #{tpu_custom_call.1} parent=47 // pred_region
          %s1794 = sand.u32 %s138, 1
          %s1795 = scalar_lea.sflag [#allocation3], %s1794
          %s1796 = sand.u32 %s138, 1
          %s1797 = smul.addr %s1796, 8
          %s1798 = scalar_lea.vmem [#allocation2], %s1797
          %1799 = dma.done %s1795, 128
        $region52: #{tpu_custom_call.1} parent=47 // pred_fallthru
          _
      $region48: #{tpu_custom_call.1} parent=5 // pred_fallthru
        _
    $region6: #{tpu_custom_call.1} parent=1 // loop_footer
      %s18 = sadd.s32 1, %s14
    $region7: #{tpu_custom_call.1} parent=1 // loop_footer_branch
      %13 = sbr.rel target = $region3
    $region8: #{tpu_custom_call.1} parent=1 // loop_exit
      _
    %1800 = vsyncpa [#allocation3], 1
    %s1801 = scalar_lea.sflag [#allocation3], 1
    %1802 = vsyncpa %s1801, 1

</llo_original>
